<compile_context>
chip_gen: v5e
topology: v5e:2x2
jax: 0.10.0
libtpu: 0.0.40
codegen_flags: <defaults>
</compile_context>

<pallas_src>
import functools

import jax
import jax.numpy as jnp
from jax import lax
from jax.experimental import pallas as pl
from jax.experimental.pallas import tpu as pltpu


# ----------------------------------------------------------------------------
# Pass 1: fused LeakyReLU -> Conv4x4/s2 -> ReLU -> ConvT4x4/s2 (+ BN partial stats)
# ----------------------------------------------------------------------------
def _unet_core_kernel(xs_ref, wd_ref, wu_ref, p_ref,
                      z_ref, zsum_ref, zssq_ref, ypad_ref,
                      *, Ho, Wo, C4, inner_nc):
    # ---- down path: LeakyReLU(0.2) + 4x4/s2 conv == 2x2-tap conv on s2d input ----
    y = None
    for t, (dy, dx) in enumerate(((0, 0), (0, 1), (1, 0), (1, 1))):
        a = xs_ref[0, dy:dy + Ho, dx:dx + Wo, :]            # (Ho, Wo, 4*C_in)
        a = jnp.where(a > 0, a, 0.2 * a)                    # LeakyReLU(0.2)
        p = a.reshape(Ho * Wo, C4)
        acc = jnp.dot(p, wd_ref[t], preferred_element_type=jnp.float32)
        y = acc if y is None else y + acc                   # (Ho*Wo, inner)
    y = jnp.maximum(y, 0.0)                                 # ReLU before up-conv

    # ---- zero-padded y kept in VMEM scratch: (Ho+2, Wo+2, inner) ----
    ypad_ref[...] = jnp.zeros(ypad_ref.shape, ypad_ref.dtype)
    ypad_ref[1:1 + Ho, 1:1 + Wo, :] = y.reshape(Ho, Wo, inner_nc)

    # the 9 distinct 2x2-tap windows used by the 4 transposed-conv phases
    S = [[ypad_ref[r:r + Ho, s:s + Wo, :].reshape(Ho * Wo, inner_nc)
          for s in range(3)] for r in range(3)]

    # ---- up path: phase-decomposed ConvTranspose2d(4x4, s=2, p=1, bias=False) ----
    dn = (((1,), (1,)), ((), ()))                           # A @ B^T (contract last dims)
    zc = None
    for ph, (py, px) in enumerate(((0, 0), (0, 1), (1, 0), (1, 1))):
        zph = None
        for t, (dy, dx) in enumerate(((0, 0), (0, 1), (1, 0), (1, 1))):
            w = wu_ref[ph, t]                               # (outer, inner)
            acc = lax.dot_general(w, S[py + dy][px + dx], dn,
                                  preferred_element_type=jnp.float32)
            zph = acc if zph is None else zph + acc         # (outer, Ho*Wo)
        # scatter this phase's columns to their oy*W+ox lane positions (perm matmul)
        zp = jnp.dot(zph, p_ref[ph], preferred_element_type=jnp.float32)
        zc = zp if zc is None else zc + zp                  # (outer, H*W), lane-dense

    z_ref[0] = zc
    # fused BN partial statistics for this image
    zsum_ref[0] = jnp.sum(zc, axis=1, keepdims=True)
    zssq_ref[0] = jnp.sum(zc * zc, axis=1, keepdims=True)


# ----------------------------------------------------------------------------
# Pass 2: BN affine + skip concat, written straight in NCHW(-flat) layout
# ----------------------------------------------------------------------------
def _bn_concat_kernel(x_ref, z_ref, scale_ref, shift_ref, o_ref, *, C_in):
    o_ref[0, :C_in, :] = x_ref[0]                                        # skip branch
    o_ref[0, C_in:, :] = z_ref[0] * scale_ref[...] + shift_ref[...]      # BN(z)


# ----------------------------------------------------------------------------
# UnetSkipConnectionBlock (innermost) forward
# ----------------------------------------------------------------------------
def unet_innermost_forward(x_nchw, w_down, w_up, gamma, beta, eps=1e-5):
    """
    x_nchw : (N, input_nc, H, W)
    w_down : (inner_nc, input_nc, 4, 4)      Conv2d weight (bias=False w/ BatchNorm)
    w_up   : (inner_nc, outer_nc, 4, 4)      ConvTranspose2d weight (bias=False)
    gamma, beta : (outer_nc,)                BatchNorm2d affine (train-mode stats)
    returns (N, input_nc + outer_nc, H, W)
    """
    N, C_in, H, W = x_nchw.shape
    inner_nc = w_down.shape[0]
    outer_nc = w_up.shape[1]
    Ho, Wo = H // 2, W // 2
    Hs, Ws = Ho + 1, Wo + 1
    HW = H * W

    x = x_nchw.astype(jnp.float32)

    # ---- small one-time layout prep in XLA (no 16x im2col expansion) ----
    x_nhwc = jnp.transpose(x, (0, 2, 3, 1))
    x_pad = jnp.pad(x_nhwc, ((0, 0), (1, 1), (1, 1), (0, 0)))
    xs2d = (x_pad.reshape(N, Hs, 2, Ws, 2, C_in)
            .transpose(0, 1, 3, 2, 4, 5)
            .reshape(N, Hs, Ws, 4 * C_in))

    # down-conv weights regrouped for the space-to-depth 2x2-tap formulation:
    #   wd_s2d[dy*2+dx, (py,px,c), co] = w_down[co, c, 2*dy+py, 2*dx+px]
    wd_t = jnp.transpose(w_down, (2, 3, 1, 0)).astype(jnp.float32)       # (ky,kx,c,co)
    wd_s2d = (wd_t.reshape(2, 2, 2, 2, C_in, inner_nc)
              .transpose(0, 2, 1, 3, 4, 5)
              .reshape(4, 4 * C_in, inner_nc))

    # transposed-conv weights per (output-parity phase, 2x2 tap), pre-transposed:
    #   wu_pt[py*2+px, dy*2+dx] = w_up[:, :, 3-py-2dy, 3-px-2dx].T  -> (outer, inner)
    wu_rows = []
    for py in range(2):
        for px in range(2):
            taps = [w_up[:, :, 3 - py - 2 * dy, 3 - px - 2 * dx].T
                    for dy in range(2) for dx in range(2)]
            wu_rows.append(jnp.stack(taps, axis=0))
    wu_pt = jnp.stack(wu_rows, axis=0).astype(jnp.float32)               # (4,4,outer,inner)

    # constant permutation matrices: phase column (by,bx) -> output lane oy*W+ox
    by = jnp.arange(Ho)[:, None]
    bx = jnp.arange(Wo)[None, :]
    lane = jnp.arange(HW)[None, :]
    pmats = []
    for py in range(2):
        for px in range(2):
            dst = ((2 * by + py) * W + (2 * bx + px)).reshape(-1, 1)     # (Ho*Wo, 1)
            pmats.append((dst == lane).astype(jnp.float32))              # (Ho*Wo, HW)
    pmat = jnp.stack(pmats, axis=0)                                      # (4, Ho*Wo, HW)

    core = functools.partial(_unet_core_kernel, Ho=Ho, Wo=Wo,
                             C4=4 * C_in, inner_nc=inner_nc)
    z, zsum, zssq = pl.pallas_call(
        core,
        out_shape=(jax.ShapeDtypeStruct((N, outer_nc, HW), jnp.float32),
                   jax.ShapeDtypeStruct((N, outer_nc, 1), jnp.float32),
                   jax.ShapeDtypeStruct((N, outer_nc, 1), jnp.float32)),
        grid=(N,),
        in_specs=[
            pl.BlockSpec((1, Hs, Ws, 4 * C_in), lambda n: (n, 0, 0, 0)),
            pl.BlockSpec((4, 4 * C_in, inner_nc), lambda n: (0, 0, 0)),
            pl.BlockSpec((4, 4, outer_nc, inner_nc), lambda n: (0, 0, 0, 0)),
            pl.BlockSpec((4, Ho * Wo, HW), lambda n: (0, 0, 0)),
        ],
        out_specs=(
            pl.BlockSpec((1, outer_nc, HW), lambda n: (n, 0, 0)),
            pl.BlockSpec((1, outer_nc, 1), lambda n: (n, 0, 0)),
            pl.BlockSpec((1, outer_nc, 1), lambda n: (n, 0, 0)),
        ),
        scratch_shapes=[pltpu.VMEM((Ho + 2, Wo + 2, inner_nc), jnp.float32)],
        compiler_params=pltpu.CompilerParams(dimension_semantics=("parallel",)),
    )(xs2d, wd_s2d, wu_pt, pmat)

    # ---- finalize BN batch statistics (tiny per-channel math) ----
    m = float(N * H * W)
    s = jnp.sum(zsum[:, :, 0], axis=0)
    ss = jnp.sum(zssq[:, :, 0], axis=0)
    mean = s / m
    var = jnp.maximum(ss / m - mean * mean, 0.0)         # clamp cancellation
    inv_std = lax.rsqrt(var + eps)
    g = gamma.astype(jnp.float32)
    b = beta.astype(jnp.float32)
    scale = (g * inv_std).reshape(outer_nc, 1)
    shift = (b - mean * g * inv_std).reshape(outer_nc, 1)

    # ---- pass 2: BN affine + skip concat, lane-dense NCHW-flat output ----
    x_flat = x.reshape(N, C_in, HW)
    out_flat = pl.pallas_call(
        functools.partial(_bn_concat_kernel, C_in=C_in),
        out_shape=jax.ShapeDtypeStruct((N, C_in + outer_nc, HW), jnp.float32),
        grid=(N,),
        in_specs=[
            pl.BlockSpec((1, C_in, HW), lambda n: (n, 0, 0)),
            pl.BlockSpec((1, outer_nc, HW), lambda n: (n, 0, 0)),
            pl.BlockSpec((outer_nc, 1), lambda n: (0, 0)),
            pl.BlockSpec((outer_nc, 1), lambda n: (0, 0)),
        ],
        out_specs=pl.BlockSpec((1, C_in + outer_nc, HW), lambda n: (n, 0, 0)),
        compiler_params=pltpu.CompilerParams(dimension_semantics=("parallel",)),
    )(x_flat, z, scale, shift)

    return out_flat.reshape(N, C_in + outer_nc, H, W)

    # TODO(synk): outermost / middle UNet variants (nested submodule, Dropout, Tanh
    # head) need a recursive composition; only the self-contained innermost block
    # is implemented here.


# ----------------------------------------------------------------------------
# Pure-JAX (lax.conv) reference for verification
# ----------------------------------------------------------------------------
def reference_forward(x, w_down, w_up, gamma, beta, eps=1e-5):
    a = jnp.where(x > 0, x, 0.2 * x)
    dn = ("NCHW", "OIHW", "NCHW")
    y = lax.conv_general_dilated(a, w_down, (2, 2), [(1, 1), (1, 1)], dimension_numbers=dn)
    r = jnp.maximum(y, 0.0)
    w_eq = jnp.transpose(jnp.flip(w_up, (2, 3)), (1, 0, 2, 3))
    z = lax.conv_general_dilated(r, w_eq, (1, 1), [(2, 2), (2, 2)],
                                 lhs_dilation=(2, 2), dimension_numbers=dn)
    mean = z.mean(axis=(0, 2, 3), keepdims=True)
    var = z.var(axis=(0, 2, 3), keepdims=True)
    zn = (z - mean) / jnp.sqrt(var + eps)
    zn = zn * gamma.reshape(1, -1, 1, 1) + beta.reshape(1, -1, 1, 1)
    return jnp.concatenate([x, zn], axis=1)


# ----------------------------------------------------------------------------
if __name__ == "__main__":
    # innermost block: input_nc = outer_nc = 4, inner_nc = 8
    N, C, H, W = 2, 4, 16, 16
    inner_nc, outer_nc = 8, 4

    key = jax.random.PRNGKey(0)
    k1, k2, k3, k4, k5 = jax.random.split(key, 5)
    x = jax.random.normal(k1, (N, C, H, W), jnp.float32)
    w_down = 0.02 * jax.random.normal(k2, (inner_nc, C, 4, 4), jnp.float32)       # Conv2d
    w_up = 0.02 * jax.random.normal(k3, (inner_nc, outer_nc, 4, 4), jnp.float32)  # ConvTranspose2d
    gamma = 1.0 + 0.02 * jax.random.normal(k4, (outer_nc,), jnp.float32)
    beta = 0.02 * jax.random.normal(k5, (outer_nc,), jnp.float32)

    out = jax.jit(unet_innermost_forward)(x, w_down, w_up, gamma, beta)
    out = jax.block_until_ready(out)

    ref = reference_forward(x, w_down, w_up, gamma, beta)
    assert out.shape == (N, C + outer_nc, H, W), out.shape
    assert jnp.allclose(out, ref, atol=1e-3, rtol=1e-3), float(jnp.max(jnp.abs(out - ref)))

    print("KERNEL_OK")
</pallas_src>

<mosaic_0001>
module attributes {stable_mosaic.version = 11 : i64} {
  func.func @_unet_core_kernel(%arg0: i32, %arg1: memref<1x9x9x16xf32, #tpu.memory_space<vmem>>, %arg2: memref<4x16x8xf32, #tpu.memory_space<vmem>>, %arg3: memref<4x4x4x8xf32, #tpu.memory_space<vmem>>, %arg4: memref<4x64x256xf32, #tpu.memory_space<vmem>>, %arg5: memref<1x4x256xf32, #tpu.memory_space<vmem>>, %arg6: memref<1x4x1xf32, #tpu.memory_space<vmem>>, %arg7: memref<1x4x1xf32, #tpu.memory_space<vmem>>, %arg8: memref<10x10x8xf32, #tpu.memory_space<vmem>>) attributes {dimension_semantics = [#tpu.dimension_semantics<parallel>], iteration_bounds = array<i64: 2>, scalar_prefetch = 0 : i64, scratch_operands = 1 : i64, tpu.core_type = #tpu.core_type<tc>, window_params = [{transform_indices = @transform_0, window_bounds = array<i64: 1, 9, 9, 16>}, {pipeline_mode = #tpu.pipeline_mode<synchronous>, transform_indices = @transform_1, window_bounds = array<i64: 4, 16, 8>}, {pipeline_mode = #tpu.pipeline_mode<synchronous>, transform_indices = @transform_2, window_bounds = array<i64: 4, 4, 4, 8>}, {pipeline_mode = #tpu.pipeline_mode<synchronous>, transform_indices = @transform_3, window_bounds = array<i64: 4, 64, 256>}, {transform_indices = @transform_4, window_bounds = array<i64: 1, 4, 256>}, {transform_indices = @transform_5, window_bounds = array<i64: 1, 4, 1>}, {transform_indices = @transform_6, window_bounds = array<i64: 1, 4, 1>}]} {
    %c0 = arith.constant 0 : index
    %c0_0 = arith.constant 0 : index
    %c0_1 = arith.constant 0 : index
    %c0_2 = arith.constant 0 : index
    %0 = vector.load %arg1[%c0, %c0_0, %c0_1, %c0_2] : memref<1x9x9x16xf32, #tpu.memory_space<vmem>>, vector<1x8x8x16xf32>
    %1 = vector.shape_cast %0 : vector<1x8x8x16xf32> to vector<8x8x16xf32>
    %cst = arith.constant 0.000000e+00 : f32
    %2 = vector.broadcast %cst : f32 to vector<8x8x16xf32>
    %3 = arith.cmpf ogt, %1, %2 : vector<8x8x16xf32>
    %cst_3 = arith.constant 2.000000e-01 : f32
    %4 = vector.broadcast %cst_3 : f32 to vector<8x8x16xf32>
    %5 = arith.mulf %4, %1 : vector<8x8x16xf32>
    %6 = arith.select %3, %1, %5 : vector<8x8x16xi1>, vector<8x8x16xf32>
    %7 = vector.shape_cast %6 : vector<8x8x16xf32> to vector<64x16xf32>
    %c0_4 = arith.constant 0 : index
    %c0_5 = arith.constant 0 : index
    %c0_6 = arith.constant 0 : index
    %8 = vector.load %arg2[%c0_4, %c0_5, %c0_6] : memref<4x16x8xf32, #tpu.memory_space<vmem>>, vector<1x16x8xf32>
    %9 = vector.shape_cast %8 : vector<1x16x8xf32> to vector<16x8xf32>
    %cst_7 = arith.constant dense<0.000000e+00> : vector<64x8xf32>
    %10 = tpu.matmul %7, %9, %cst_7 {dimension_numbers = #tpu.dot_dimension_numbers<[1], [0], [0], [1], [0, 0, 1, 1], [], []>} : vector<64x16xf32>, vector<16x8xf32>, vector<64x8xf32> -> vector<64x8xf32>
    %c0_8 = arith.constant 0 : index
    %c0_9 = arith.constant 0 : index
    %c1 = arith.constant 1 : index
    %c0_10 = arith.constant 0 : index
    %11 = vector.load %arg1[%c0_8, %c0_9, %c1, %c0_10] : memref<1x9x9x16xf32, #tpu.memory_space<vmem>>, vector<1x8x8x16xf32>
    %12 = vector.shape_cast %11 : vector<1x8x8x16xf32> to vector<8x8x16xf32>
    %cst_11 = arith.constant 0.000000e+00 : f32
    %13 = vector.broadcast %cst_11 : f32 to vector<8x8x16xf32>
    %14 = arith.cmpf ogt, %12, %13 : vector<8x8x16xf32>
    %cst_12 = arith.constant 2.000000e-01 : f32
    %15 = vector.broadcast %cst_12 : f32 to vector<8x8x16xf32>
    %16 = arith.mulf %15, %12 : vector<8x8x16xf32>
    %17 = arith.select %14, %12, %16 : vector<8x8x16xi1>, vector<8x8x16xf32>
    %18 = vector.shape_cast %17 : vector<8x8x16xf32> to vector<64x16xf32>
    %c1_13 = arith.constant 1 : index
    %c0_14 = arith.constant 0 : index
    %c0_15 = arith.constant 0 : index
    %19 = vector.load %arg2[%c1_13, %c0_14, %c0_15] : memref<4x16x8xf32, #tpu.memory_space<vmem>>, vector<1x16x8xf32>
    %20 = vector.shape_cast %19 : vector<1x16x8xf32> to vector<16x8xf32>
    %cst_16 = arith.constant dense<0.000000e+00> : vector<64x8xf32>
    %21 = tpu.matmul %18, %20, %cst_16 {dimension_numbers = #tpu.dot_dimension_numbers<[1], [0], [0], [1], [0, 0, 1, 1], [], []>} : vector<64x16xf32>, vector<16x8xf32>, vector<64x8xf32> -> vector<64x8xf32>
    %22 = arith.addf %10, %21 : vector<64x8xf32>
    %c0_17 = arith.constant 0 : index
    %c1_18 = arith.constant 1 : index
    %c0_19 = arith.constant 0 : index
    %c0_20 = arith.constant 0 : index
    %23 = vector.load %arg1[%c0_17, %c1_18, %c0_19, %c0_20] : memref<1x9x9x16xf32, #tpu.memory_space<vmem>>, vector<1x8x8x16xf32>
    %24 = vector.shape_cast %23 : vector<1x8x8x16xf32> to vector<8x8x16xf32>
    %cst_21 = arith.constant 0.000000e+00 : f32
    %25 = vector.broadcast %cst_21 : f32 to vector<8x8x16xf32>
    %26 = arith.cmpf ogt, %24, %25 : vector<8x8x16xf32>
    %cst_22 = arith.constant 2.000000e-01 : f32
    %27 = vector.broadcast %cst_22 : f32 to vector<8x8x16xf32>
    %28 = arith.mulf %27, %24 : vector<8x8x16xf32>
    %29 = arith.select %26, %24, %28 : vector<8x8x16xi1>, vector<8x8x16xf32>
    %30 = vector.shape_cast %29 : vector<8x8x16xf32> to vector<64x16xf32>
    %c2 = arith.constant 2 : index
    %c0_23 = arith.constant 0 : index
    %c0_24 = arith.constant 0 : index
    %31 = vector.load %arg2[%c2, %c0_23, %c0_24] : memref<4x16x8xf32, #tpu.memory_space<vmem>>, vector<1x16x8xf32>
    %32 = vector.shape_cast %31 : vector<1x16x8xf32> to vector<16x8xf32>
    %cst_25 = arith.constant dense<0.000000e+00> : vector<64x8xf32>
    %33 = tpu.matmul %30, %32, %cst_25 {dimension_numbers = #tpu.dot_dimension_numbers<[1], [0], [0], [1], [0, 0, 1, 1], [], []>} : vector<64x16xf32>, vector<16x8xf32>, vector<64x8xf32> -> vector<64x8xf32>
    %34 = arith.addf %22, %33 : vector<64x8xf32>
    %c0_26 = arith.constant 0 : index
    %c1_27 = arith.constant 1 : index
    %c1_28 = arith.constant 1 : index
    %c0_29 = arith.constant 0 : index
    %35 = vector.load %arg1[%c0_26, %c1_27, %c1_28, %c0_29] : memref<1x9x9x16xf32, #tpu.memory_space<vmem>>, vector<1x8x8x16xf32>
    %36 = vector.shape_cast %35 : vector<1x8x8x16xf32> to vector<8x8x16xf32>
    %cst_30 = arith.constant 0.000000e+00 : f32
    %37 = vector.broadcast %cst_30 : f32 to vector<8x8x16xf32>
    %38 = arith.cmpf ogt, %36, %37 : vector<8x8x16xf32>
    %cst_31 = arith.constant 2.000000e-01 : f32
    %39 = vector.broadcast %cst_31 : f32 to vector<8x8x16xf32>
    %40 = arith.mulf %39, %36 : vector<8x8x16xf32>
    %41 = arith.select %38, %36, %40 : vector<8x8x16xi1>, vector<8x8x16xf32>
    %42 = vector.shape_cast %41 : vector<8x8x16xf32> to vector<64x16xf32>
    %c3 = arith.constant 3 : index
    %c0_32 = arith.constant 0 : index
    %c0_33 = arith.constant 0 : index
    %43 = vector.load %arg2[%c3, %c0_32, %c0_33] : memref<4x16x8xf32, #tpu.memory_space<vmem>>, vector<1x16x8xf32>
    %44 = vector.shape_cast %43 : vector<1x16x8xf32> to vector<16x8xf32>
    %cst_34 = arith.constant dense<0.000000e+00> : vector<64x8xf32>
    %45 = tpu.matmul %42, %44, %cst_34 {dimension_numbers = #tpu.dot_dimension_numbers<[1], [0], [0], [1], [0, 0, 1, 1], [], []>} : vector<64x16xf32>, vector<16x8xf32>, vector<64x8xf32> -> vector<64x8xf32>
    %46 = arith.addf %34, %45 : vector<64x8xf32>
    %cst_35 = arith.constant 0.000000e+00 : f32
    %47 = vector.broadcast %cst_35 : f32 to vector<64x8xf32>
    %48 = arith.maximumf %46, %47 : vector<64x8xf32>
    %cst_36 = arith.constant 0.000000e+00 : f32
    %49 = vector.broadcast %cst_36 : f32 to vector<10x10x8xf32>
    %c0_37 = arith.constant 0 : index
    %c0_38 = arith.constant 0 : index
    %c0_39 = arith.constant 0 : index
    %50 = vector.load %arg8[%c0_37, %c0_38, %c0_39] : memref<10x10x8xf32, #tpu.memory_space<vmem>>, vector<10x10x8xf32>
    tpu.vector_store %arg8[%c0_37, %c0_38, %c0_39], %49 {strides = array<i32>} : memref<10x10x8xf32, #tpu.memory_space<vmem>>, vector<10x10x8xf32>,
    %51 = vector.shape_cast %48 : vector<64x8xf32> to vector<8x8x8xf32>
    %c1_40 = arith.constant 1 : index
    %c1_41 = arith.constant 1 : index
    %c0_42 = arith.constant 0 : index
    %52 = vector.load %arg8[%c1_40, %c1_41, %c0_42] : memref<10x10x8xf32, #tpu.memory_space<vmem>>, vector<8x8x8xf32>
    tpu.vector_store %arg8[%c1_40, %c1_41, %c0_42], %51 {strides = array<i32>} : memref<10x10x8xf32, #tpu.memory_space<vmem>>, vector<8x8x8xf32>,
    %c0_43 = arith.constant 0 : index
    %c0_44 = arith.constant 0 : index
    %c0_45 = arith.constant 0 : index
    %53 = vector.load %arg8[%c0_43, %c0_44, %c0_45] : memref<10x10x8xf32, #tpu.memory_space<vmem>>, vector<8x8x8xf32>
    %54 = vector.shape_cast %53 : vector<8x8x8xf32> to vector<64x8xf32>
    %c0_46 = arith.constant 0 : index
    %c1_47 = arith.constant 1 : index
    %c0_48 = arith.constant 0 : index
    %55 = vector.load %arg8[%c0_46, %c1_47, %c0_48] : memref<10x10x8xf32, #tpu.memory_space<vmem>>, vector<8x8x8xf32>
    %56 = vector.shape_cast %55 : vector<8x8x8xf32> to vector<64x8xf32>
    %c0_49 = arith.constant 0 : index
    %c2_50 = arith.constant 2 : index
    %c0_51 = arith.constant 0 : index
    %57 = vector.load %arg8[%c0_49, %c2_50, %c0_51] : memref<10x10x8xf32, #tpu.memory_space<vmem>>, vector<8x8x8xf32>
    %58 = vector.shape_cast %57 : vector<8x8x8xf32> to vector<64x8xf32>
    %c1_52 = arith.constant 1 : index
    %c0_53 = arith.constant 0 : index
    %c0_54 = arith.constant 0 : index
    %59 = vector.load %arg8[%c1_52, %c0_53, %c0_54] : memref<10x10x8xf32, #tpu.memory_space<vmem>>, vector<8x8x8xf32>
    %60 = vector.shape_cast %59 : vector<8x8x8xf32> to vector<64x8xf32>
    %c1_55 = arith.constant 1 : index
    %c1_56 = arith.constant 1 : index
    %c0_57 = arith.constant 0 : index
    %61 = vector.load %arg8[%c1_55, %c1_56, %c0_57] : memref<10x10x8xf32, #tpu.memory_space<vmem>>, vector<8x8x8xf32>
    %62 = vector.shape_cast %61 : vector<8x8x8xf32> to vector<64x8xf32>
    %c1_58 = arith.constant 1 : index
    %c2_59 = arith.constant 2 : index
    %c0_60 = arith.constant 0 : index
    %63 = vector.load %arg8[%c1_58, %c2_59, %c0_60] : memref<10x10x8xf32, #tpu.memory_space<vmem>>, vector<8x8x8xf32>
    %64 = vector.shape_cast %63 : vector<8x8x8xf32> to vector<64x8xf32>
    %c2_61 = arith.constant 2 : index
    %c0_62 = arith.constant 0 : index
    %c0_63 = arith.constant 0 : index
    %65 = vector.load %arg8[%c2_61, %c0_62, %c0_63] : memref<10x10x8xf32, #tpu.memory_space<vmem>>, vector<8x8x8xf32>
    %66 = vector.shape_cast %65 : vector<8x8x8xf32> to vector<64x8xf32>
    %c2_64 = arith.constant 2 : index
    %c1_65 = arith.constant 1 : index
    %c0_66 = arith.constant 0 : index
    %67 = vector.load %arg8[%c2_64, %c1_65, %c0_66] : memref<10x10x8xf32, #tpu.memory_space<vmem>>, vector<8x8x8xf32>
    %68 = vector.shape_cast %67 : vector<8x8x8xf32> to vector<64x8xf32>
    %c2_67 = arith.constant 2 : index
    %c2_68 = arith.constant 2 : index
    %c0_69 = arith.constant 0 : index
    %69 = vector.load %arg8[%c2_67, %c2_68, %c0_69] : memref<10x10x8xf32, #tpu.memory_space<vmem>>, vector<8x8x8xf32>
    %70 = vector.shape_cast %69 : vector<8x8x8xf32> to vector<64x8xf32>
    %c0_70 = arith.constant 0 : index
    %c0_71 = arith.constant 0 : index
    %c0_72 = arith.constant 0 : index
    %c0_73 = arith.constant 0 : index
    %71 = vector.load %arg3[%c0_70, %c0_71, %c0_72, %c0_73] : memref<4x4x4x8xf32, #tpu.memory_space<vmem>>, vector<1x1x4x8xf32>
    %72 = vector.shape_cast %71 : vector<1x1x4x8xf32> to vector<4x8xf32>
    %cst_74 = arith.constant dense<0.000000e+00> : vector<4x64xf32>
    %73 = tpu.matmul %72, %54, %cst_74 {dimension_numbers = #tpu.dot_dimension_numbers<[1], [1], [0], [0], [0, 0, 1, 0], [], []>} : vector<4x8xf32>, vector<64x8xf32>, vector<4x64xf32> -> vector<4x64xf32>
    %c0_75 = arith.constant 0 : index
    %c1_76 = arith.constant 1 : index
    %c0_77 = arith.constant 0 : index
    %c0_78 = arith.constant 0 : index
    %74 = vector.load %arg3[%c0_75, %c1_76, %c0_77, %c0_78] : memref<4x4x4x8xf32, #tpu.memory_space<vmem>>, vector<1x1x4x8xf32>
    %75 = vector.shape_cast %74 : vector<1x1x4x8xf32> to vector<4x8xf32>
    %cst_79 = arith.constant dense<0.000000e+00> : vector<4x64xf32>
    %76 = tpu.matmul %75, %56, %cst_79 {dimension_numbers = #tpu.dot_dimension_numbers<[1], [1], [0], [0], [0, 0, 1, 0], [], []>} : vector<4x8xf32>, vector<64x8xf32>, vector<4x64xf32> -> vector<4x64xf32>
    %77 = arith.addf %73, %76 : vector<4x64xf32>
    %c0_80 = arith.constant 0 : index
    %c2_81 = arith.constant 2 : index
    %c0_82 = arith.constant 0 : index
    %c0_83 = arith.constant 0 : index
    %78 = vector.load %arg3[%c0_80, %c2_81, %c0_82, %c0_83] : memref<4x4x4x8xf32, #tpu.memory_space<vmem>>, vector<1x1x4x8xf32>
    %79 = vector.shape_cast %78 : vector<1x1x4x8xf32> to vector<4x8xf32>
    %cst_84 = arith.constant dense<0.000000e+00> : vector<4x64xf32>
    %80 = tpu.matmul %79, %60, %cst_84 {dimension_numbers = #tpu.dot_dimension_numbers<[1], [1], [0], [0], [0, 0, 1, 0], [], []>} : vector<4x8xf32>, vector<64x8xf32>, vector<4x64xf32> -> vector<4x64xf32>
    %81 = arith.addf %77, %80 : vector<4x64xf32>
    %c0_85 = arith.constant 0 : index
    %c3_86 = arith.constant 3 : index
    %c0_87 = arith.constant 0 : index
    %c0_88 = arith.constant 0 : index
    %82 = vector.load %arg3[%c0_85, %c3_86, %c0_87, %c0_88] : memref<4x4x4x8xf32, #tpu.memory_space<vmem>>, vector<1x1x4x8xf32>
    %83 = vector.shape_cast %82 : vector<1x1x4x8xf32> to vector<4x8xf32>
    %cst_89 = arith.constant dense<0.000000e+00> : vector<4x64xf32>
    %84 = tpu.matmul %83, %62, %cst_89 {dimension_numbers = #tpu.dot_dimension_numbers<[1], [1], [0], [0], [0, 0, 1, 0], [], []>} : vector<4x8xf32>, vector<64x8xf32>, vector<4x64xf32> -> vector<4x64xf32>
    %85 = arith.addf %81, %84 : vector<4x64xf32>
    %c0_90 = arith.constant 0 : index
    %c0_91 = arith.constant 0 : index
    %c0_92 = arith.constant 0 : index
    %86 = vector.load %arg4[%c0_90, %c0_91, %c0_92] : memref<4x64x256xf32, #tpu.memory_space<vmem>>, vector<1x64x256xf32>
    %87 = vector.shape_cast %86 : vector<1x64x256xf32> to vector<64x256xf32>
    %cst_93 = arith.constant dense<0.000000e+00> : vector<4x256xf32>
    %88 = tpu.matmul %85, %87, %cst_93 {dimension_numbers = #tpu.dot_dimension_numbers<[1], [0], [0], [1], [0, 0, 1, 1], [], []>} : vector<4x64xf32>, vector<64x256xf32>, vector<4x256xf32> -> vector<4x256xf32>
    %c1_94 = arith.constant 1 : index
    %c0_95 = arith.constant 0 : index
    %c0_96 = arith.constant 0 : index
    %c0_97 = arith.constant 0 : index
    %89 = vector.load %arg3[%c1_94, %c0_95, %c0_96, %c0_97] : memref<4x4x4x8xf32, #tpu.memory_space<vmem>>, vector<1x1x4x8xf32>
    %90 = vector.shape_cast %89 : vector<1x1x4x8xf32> to vector<4x8xf32>
    %cst_98 = arith.constant dense<0.000000e+00> : vector<4x64xf32>
    %91 = tpu.matmul %90, %56, %cst_98 {dimension_numbers = #tpu.dot_dimension_numbers<[1], [1], [0], [0], [0, 0, 1, 0], [], []>} : vector<4x8xf32>, vector<64x8xf32>, vector<4x64xf32> -> vector<4x64xf32>
    %c1_99 = arith.constant 1 : index
    %c1_100 = arith.constant 1 : index
    %c0_101 = arith.constant 0 : index
    %c0_102 = arith.constant 0 : index
    %92 = vector.load %arg3[%c1_99, %c1_100, %c0_101, %c0_102] : memref<4x4x4x8xf32, #tpu.memory_space<vmem>>, vector<1x1x4x8xf32>
    %93 = vector.shape_cast %92 : vector<1x1x4x8xf32> to vector<4x8xf32>
    %cst_103 = arith.constant dense<0.000000e+00> : vector<4x64xf32>
    %94 = tpu.matmul %93, %58, %cst_103 {dimension_numbers = #tpu.dot_dimension_numbers<[1], [1], [0], [0], [0, 0, 1, 0], [], []>} : vector<4x8xf32>, vector<64x8xf32>, vector<4x64xf32> -> vector<4x64xf32>
    %95 = arith.addf %91, %94 : vector<4x64xf32>
    %c1_104 = arith.constant 1 : index
    %c2_105 = arith.constant 2 : index
    %c0_106 = arith.constant 0 : index
    %c0_107 = arith.constant 0 : index
    %96 = vector.load %arg3[%c1_104, %c2_105, %c0_106, %c0_107] : memref<4x4x4x8xf32, #tpu.memory_space<vmem>>, vector<1x1x4x8xf32>
    %97 = vector.shape_cast %96 : vector<1x1x4x8xf32> to vector<4x8xf32>
    %cst_108 = arith.constant dense<0.000000e+00> : vector<4x64xf32>
    %98 = tpu.matmul %97, %62, %cst_108 {dimension_numbers = #tpu.dot_dimension_numbers<[1], [1], [0], [0], [0, 0, 1, 0], [], []>} : vector<4x8xf32>, vector<64x8xf32>, vector<4x64xf32> -> vector<4x64xf32>
    %99 = arith.addf %95, %98 : vector<4x64xf32>
    %c1_109 = arith.constant 1 : index
    %c3_110 = arith.constant 3 : index
    %c0_111 = arith.constant 0 : index
    %c0_112 = arith.constant 0 : index
    %100 = vector.load %arg3[%c1_109, %c3_110, %c0_111, %c0_112] : memref<4x4x4x8xf32, #tpu.memory_space<vmem>>, vector<1x1x4x8xf32>
    %101 = vector.shape_cast %100 : vector<1x1x4x8xf32> to vector<4x8xf32>
    %cst_113 = arith.constant dense<0.000000e+00> : vector<4x64xf32>
    %102 = tpu.matmul %101, %64, %cst_113 {dimension_numbers = #tpu.dot_dimension_numbers<[1], [1], [0], [0], [0, 0, 1, 0], [], []>} : vector<4x8xf32>, vector<64x8xf32>, vector<4x64xf32> -> vector<4x64xf32>
    %103 = arith.addf %99, %102 : vector<4x64xf32>
    %c1_114 = arith.constant 1 : index
    %c0_115 = arith.constant 0 : index
    %c0_116 = arith.constant 0 : index
    %104 = vector.load %arg4[%c1_114, %c0_115, %c0_116] : memref<4x64x256xf32, #tpu.memory_space<vmem>>, vector<1x64x256xf32>
    %105 = vector.shape_cast %104 : vector<1x64x256xf32> to vector<64x256xf32>
    %cst_117 = arith.constant dense<0.000000e+00> : vector<4x256xf32>
    %106 = tpu.matmul %103, %105, %cst_117 {dimension_numbers = #tpu.dot_dimension_numbers<[1], [0], [0], [1], [0, 0, 1, 1], [], []>} : vector<4x64xf32>, vector<64x256xf32>, vector<4x256xf32> -> vector<4x256xf32>
    %107 = arith.addf %88, %106 : vector<4x256xf32>
    %c2_118 = arith.constant 2 : index
    %c0_119 = arith.constant 0 : index
    %c0_120 = arith.constant 0 : index
    %c0_121 = arith.constant 0 : index
    %108 = vector.load %arg3[%c2_118, %c0_119, %c0_120, %c0_121] : memref<4x4x4x8xf32, #tpu.memory_space<vmem>>, vector<1x1x4x8xf32>
    %109 = vector.shape_cast %108 : vector<1x1x4x8xf32> to vector<4x8xf32>
    %cst_122 = arith.constant dense<0.000000e+00> : vector<4x64xf32>
    %110 = tpu.matmul %109, %60, %cst_122 {dimension_numbers = #tpu.dot_dimension_numbers<[1], [1], [0], [0], [0, 0, 1, 0], [], []>} : vector<4x8xf32>, vector<64x8xf32>, vector<4x64xf32> -> vector<4x64xf32>
    %c2_123 = arith.constant 2 : index
    %c1_124 = arith.constant 1 : index
    %c0_125 = arith.constant 0 : index
    %c0_126 = arith.constant 0 : index
    %111 = vector.load %arg3[%c2_123, %c1_124, %c0_125, %c0_126] : memref<4x4x4x8xf32, #tpu.memory_space<vmem>>, vector<1x1x4x8xf32>
    %112 = vector.shape_cast %111 : vector<1x1x4x8xf32> to vector<4x8xf32>
    %cst_127 = arith.constant dense<0.000000e+00> : vector<4x64xf32>
    %113 = tpu.matmul %112, %62, %cst_127 {dimension_numbers = #tpu.dot_dimension_numbers<[1], [1], [0], [0], [0, 0, 1, 0], [], []>} : vector<4x8xf32>, vector<64x8xf32>, vector<4x64xf32> -> vector<4x64xf32>
    %114 = arith.addf %110, %113 : vector<4x64xf32>
    %c2_128 = arith.constant 2 : index
    %c2_129 = arith.constant 2 : index
    %c0_130 = arith.constant 0 : index
    %c0_131 = arith.constant 0 : index
    %115 = vector.load %arg3[%c2_128, %c2_129, %c0_130, %c0_131] : memref<4x4x4x8xf32, #tpu.memory_space<vmem>>, vector<1x1x4x8xf32>
    %116 = vector.shape_cast %115 : vector<1x1x4x8xf32> to vector<4x8xf32>
    %cst_132 = arith.constant dense<0.000000e+00> : vector<4x64xf32>
    %117 = tpu.matmul %116, %66, %cst_132 {dimension_numbers = #tpu.dot_dimension_numbers<[1], [1], [0], [0], [0, 0, 1, 0], [], []>} : vector<4x8xf32>, vector<64x8xf32>, vector<4x64xf32> -> vector<4x64xf32>
    %118 = arith.addf %114, %117 : vector<4x64xf32>
    %c2_133 = arith.constant 2 : index
    %c3_134 = arith.constant 3 : index
    %c0_135 = arith.constant 0 : index
    %c0_136 = arith.constant 0 : index
    %119 = vector.load %arg3[%c2_133, %c3_134, %c0_135, %c0_136] : memref<4x4x4x8xf32, #tpu.memory_space<vmem>>, vector<1x1x4x8xf32>
    %120 = vector.shape_cast %119 : vector<1x1x4x8xf32> to vector<4x8xf32>
    %cst_137 = arith.constant dense<0.000000e+00> : vector<4x64xf32>
    %121 = tpu.matmul %120, %68, %cst_137 {dimension_numbers = #tpu.dot_dimension_numbers<[1], [1], [0], [0], [0, 0, 1, 0], [], []>} : vector<4x8xf32>, vector<64x8xf32>, vector<4x64xf32> -> vector<4x64xf32>
    %122 = arith.addf %118, %121 : vector<4x64xf32>
    %c2_138 = arith.constant 2 : index
    %c0_139 = arith.constant 0 : index
    %c0_140 = arith.constant 0 : index
    %123 = vector.load %arg4[%c2_138, %c0_139, %c0_140] : memref<4x64x256xf32, #tpu.memory_space<vmem>>, vector<1x64x256xf32>
    %124 = vector.shape_cast %123 : vector<1x64x256xf32> to vector<64x256xf32>
    %cst_141 = arith.constant dense<0.000000e+00> : vector<4x256xf32>
    %125 = tpu.matmul %122, %124, %cst_141 {dimension_numbers = #tpu.dot_dimension_numbers<[1], [0], [0], [1], [0, 0, 1, 1], [], []>} : vector<4x64xf32>, vector<64x256xf32>, vector<4x256xf32> -> vector<4x256xf32>
    %126 = arith.addf %107, %125 : vector<4x256xf32>
    %c3_142 = arith.constant 3 : index
    %c0_143 = arith.constant 0 : index
    %c0_144 = arith.constant 0 : index
    %c0_145 = arith.constant 0 : index
    %127 = vector.load %arg3[%c3_142, %c0_143, %c0_144, %c0_145] : memref<4x4x4x8xf32, #tpu.memory_space<vmem>>, vector<1x1x4x8xf32>
    %128 = vector.shape_cast %127 : vector<1x1x4x8xf32> to vector<4x8xf32>
    %cst_146 = arith.constant dense<0.000000e+00> : vector<4x64xf32>
    %129 = tpu.matmul %128, %62, %cst_146 {dimension_numbers = #tpu.dot_dimension_numbers<[1], [1], [0], [0], [0, 0, 1, 0], [], []>} : vector<4x8xf32>, vector<64x8xf32>, vector<4x64xf32> -> vector<4x64xf32>
    %c3_147 = arith.constant 3 : index
    %c1_148 = arith.constant 1 : index
    %c0_149 = arith.constant 0 : index
    %c0_150 = arith.constant 0 : index
    %130 = vector.load %arg3[%c3_147, %c1_148, %c0_149, %c0_150] : memref<4x4x4x8xf32, #tpu.memory_space<vmem>>, vector<1x1x4x8xf32>
    %131 = vector.shape_cast %130 : vector<1x1x4x8xf32> to vector<4x8xf32>
    %cst_151 = arith.constant dense<0.000000e+00> : vector<4x64xf32>
    %132 = tpu.matmul %131, %64, %cst_151 {dimension_numbers = #tpu.dot_dimension_numbers<[1], [1], [0], [0], [0, 0, 1, 0], [], []>} : vector<4x8xf32>, vector<64x8xf32>, vector<4x64xf32> -> vector<4x64xf32>
    %133 = arith.addf %129, %132 : vector<4x64xf32>
    %c3_152 = arith.constant 3 : index
    %c2_153 = arith.constant 2 : index
    %c0_154 = arith.constant 0 : index
    %c0_155 = arith.constant 0 : index
    %134 = vector.load %arg3[%c3_152, %c2_153, %c0_154, %c0_155] : memref<4x4x4x8xf32, #tpu.memory_space<vmem>>, vector<1x1x4x8xf32>
    %135 = vector.shape_cast %134 : vector<1x1x4x8xf32> to vector<4x8xf32>
    %cst_156 = arith.constant dense<0.000000e+00> : vector<4x64xf32>
    %136 = tpu.matmul %135, %68, %cst_156 {dimension_numbers = #tpu.dot_dimension_numbers<[1], [1], [0], [0], [0, 0, 1, 0], [], []>} : vector<4x8xf32>, vector<64x8xf32>, vector<4x64xf32> -> vector<4x64xf32>
    %137 = arith.addf %133, %136 : vector<4x64xf32>
    %c3_157 = arith.constant 3 : index
    %c3_158 = arith.constant 3 : index
    %c0_159 = arith.constant 0 : index
    %c0_160 = arith.constant 0 : index
    %138 = vector.load %arg3[%c3_157, %c3_158, %c0_159, %c0_160] : memref<4x4x4x8xf32, #tpu.memory_space<vmem>>, vector<1x1x4x8xf32>
    %139 = vector.shape_cast %138 : vector<1x1x4x8xf32> to vector<4x8xf32>
    %cst_161 = arith.constant dense<0.000000e+00> : vector<4x64xf32>
    %140 = tpu.matmul %139, %70, %cst_161 {dimension_numbers = #tpu.dot_dimension_numbers<[1], [1], [0], [0], [0, 0, 1, 0], [], []>} : vector<4x8xf32>, vector<64x8xf32>, vector<4x64xf32> -> vector<4x64xf32>
    %141 = arith.addf %137, %140 : vector<4x64xf32>
    %c3_162 = arith.constant 3 : index
    %c0_163 = arith.constant 0 : index
    %c0_164 = arith.constant 0 : index
    %142 = vector.load %arg4[%c3_162, %c0_163, %c0_164] : memref<4x64x256xf32, #tpu.memory_space<vmem>>, vector<1x64x256xf32>
    %143 = vector.shape_cast %142 : vector<1x64x256xf32> to vector<64x256xf32>
    %cst_165 = arith.constant dense<0.000000e+00> : vector<4x256xf32>
    %144 = tpu.matmul %141, %143, %cst_165 {dimension_numbers = #tpu.dot_dimension_numbers<[1], [0], [0], [1], [0, 0, 1, 1], [], []>} : vector<4x64xf32>, vector<64x256xf32>, vector<4x256xf32> -> vector<4x256xf32>
    %145 = arith.addf %126, %144 : vector<4x256xf32>
    %c0_166 = arith.constant 0 : index
    %c0_167 = arith.constant 0 : index
    %c0_168 = arith.constant 0 : index
    %146 = vector.load %arg5[%c0_166, %c0_167, %c0_168] : memref<1x4x256xf32, #tpu.memory_space<vmem>>, vector<1x4x256xf32>
    %147 = vector.shape_cast %146 : vector<1x4x256xf32> to vector<4x256xf32>
    %148 = vector.shape_cast %145 : vector<4x256xf32> to vector<1x4x256xf32>
    tpu.vector_store %arg5[%c0_166, %c0_167, %c0_168], %148 {strides = array<i32>} : memref<1x4x256xf32, #tpu.memory_space<vmem>>, vector<1x4x256xf32>,
    %cst_169 = arith.constant dense<0.000000e+00> : vector<4xf32>
    %149 = vector.multi_reduction <add>, %145, %cst_169 [1] : vector<4x256xf32> to vector<4xf32>
    %150 = vector.shape_cast %149 : vector<4xf32> to vector<4x1xf32>
    %c0_170 = arith.constant 0 : index
    %c0_171 = arith.constant 0 : index
    %c0_172 = arith.constant 0 : index
    %151 = vector.load %arg6[%c0_170, %c0_171, %c0_172] : memref<1x4x1xf32, #tpu.memory_space<vmem>>, vector<1x4x1xf32>
    %152 = vector.shape_cast %151 : vector<1x4x1xf32> to vector<4x1xf32>
    %153 = vector.shape_cast %150 : vector<4x1xf32> to vector<1x4x1xf32>
    tpu.vector_store %arg6[%c0_170, %c0_171, %c0_172], %153 {strides = array<i32>} : memref<1x4x1xf32, #tpu.memory_space<vmem>>, vector<1x4x1xf32>,
    %154 = arith.mulf %145, %145 : vector<4x256xf32>
    %cst_173 = arith.constant dense<0.000000e+00> : vector<4xf32>
    %155 = vector.multi_reduction <add>, %154, %cst_173 [1] : vector<4x256xf32> to vector<4xf32>
    %156 = vector.shape_cast %155 : vector<4xf32> to vector<4x1xf32>
    %c0_174 = arith.constant 0 : index
    %c0_175 = arith.constant 0 : index
    %c0_176 = arith.constant 0 : index
    %157 = vector.load %arg7[%c0_174, %c0_175, %c0_176] : memref<1x4x1xf32, #tpu.memory_space<vmem>>, vector<1x4x1xf32>
    %158 = vector.shape_cast %157 : vector<1x4x1xf32> to vector<4x1xf32>
    %159 = vector.shape_cast %156 : vector<4x1xf32> to vector<1x4x1xf32>
    tpu.vector_store %arg7[%c0_174, %c0_175, %c0_176], %159 {strides = array<i32>} : memref<1x4x1xf32, #tpu.memory_space<vmem>>, vector<1x4x1xf32>,
    return
  }
  func.func @transform_0(%arg0: i32) -> (i32, i32, i32, i32) {
    %c0_i32 = arith.constant 0 : i32
    %c0_i32_0 = arith.constant 0 : i32
    %c0_i32_1 = arith.constant 0 : i32
    %c0_i32_2 = arith.constant 0 : i32
    return %arg0, %c0_i32, %c0_i32_0, %c0_i32_1 : i32, i32, i32, i32
  }
  func.func @transform_1(%arg0: i32) -> (i32, i32, i32) {
    %c0_i32 = arith.constant 0 : i32
    %c0_i32_0 = arith.constant 0 : i32
    %c0_i32_1 = arith.constant 0 : i32
    %c0_i32_2 = arith.constant 0 : i32
    return %c0_i32, %c0_i32_0, %c0_i32_1 : i32, i32, i32
  }
  func.func @transform_2(%arg0: i32) -> (i32, i32, i32, i32) {
    %c0_i32 = arith.constant 0 : i32
    %c0_i32_0 = arith.constant 0 : i32
    %c0_i32_1 = arith.constant 0 : i32
    %c0_i32_2 = arith.constant 0 : i32
    %c0_i32_3 = arith.constant 0 : i32
    return %c0_i32, %c0_i32_0, %c0_i32_1, %c0_i32_2 : i32, i32, i32, i32
  }
  func.func @transform_3(%arg0: i32) -> (i32, i32, i32) {
    %c0_i32 = arith.constant 0 : i32
    %c0_i32_0 = arith.constant 0 : i32
    %c0_i32_1 = arith.constant 0 : i32
    %c0_i32_2 = arith.constant 0 : i32
    return %c0_i32, %c0_i32_0, %c0_i32_1 : i32, i32, i32
  }
  func.func @transform_4(%arg0: i32) -> (i32, i32, i32) {
    %c0_i32 = arith.constant 0 : i32
    %c0_i32_0 = arith.constant 0 : i32
    %c0_i32_1 = arith.constant 0 : i32
    return %arg0, %c0_i32, %c0_i32_0 : i32, i32, i32
  }
  func.func @transform_5(%arg0: i32) -> (i32, i32, i32) {
    %c0_i32 = arith.constant 0 : i32
    %c0_i32_0 = arith.constant 0 : i32
    %c0_i32_1 = arith.constant 0 : i32
    return %arg0, %c0_i32, %c0_i32_0 : i32, i32, i32
  }
  func.func @transform_6(%arg0: i32) -> (i32, i32, i32) {
    %c0_i32 = arith.constant 0 : i32
    %c0_i32_0 = arith.constant 0 : i32
    %c0_i32_1 = arith.constant 0 : i32
    return %arg0, %c0_i32, %c0_i32_0 : i32, i32, i32
  }
}

module attributes {stable_mosaic.version = 11 : i64} {
  func.func @_bn_concat_kernel(%arg0: i32, %arg1: memref<1x4x256xf32, #tpu.memory_space<vmem>>, %arg2: memref<1x4x256xf32, #tpu.memory_space<vmem>>, %arg3: memref<4x1xf32, #tpu.memory_space<vmem>>, %arg4: memref<4x1xf32, #tpu.memory_space<vmem>>, %arg5: memref<1x8x256xf32, #tpu.memory_space<vmem>>) attributes {dimension_semantics = [#tpu.dimension_semantics<parallel>], iteration_bounds = array<i64: 2>, scalar_prefetch = 0 : i64, scratch_operands = 0 : i64, tpu.core_type = #tpu.core_type<tc>, window_params = [{transform_indices = @transform_0, window_bounds = array<i64: 1, 4, 256>}, {transform_indices = @transform_1, window_bounds = array<i64: 1, 4, 256>}, {pipeline_mode = #tpu.pipeline_mode<synchronous>, transform_indices = @transform_2, window_bounds = array<i64: 4, 1>}, {pipeline_mode = #tpu.pipeline_mode<synchronous>, transform_indices = @transform_3, window_bounds = array<i64: 4, 1>}, {transform_indices = @transform_4, window_bounds = array<i64: 1, 8, 256>}]} {
    %c0 = arith.constant 0 : index
    %c0_0 = arith.constant 0 : index
    %c0_1 = arith.constant 0 : index
    %0 = vector.load %arg1[%c0, %c0_0, %c0_1] : memref<1x4x256xf32, #tpu.memory_space<vmem>>, vector<1x4x256xf32>
    %1 = vector.shape_cast %0 : vector<1x4x256xf32> to vector<4x256xf32>
    %c0_2 = arith.constant 0 : index
    %c0_3 = arith.constant 0 : index
    %c0_4 = arith.constant 0 : index
    %2 = vector.load %arg5[%c0_2, %c0_3, %c0_4] : memref<1x8x256xf32, #tpu.memory_space<vmem>>, vector<1x4x256xf32>
    %3 = vector.shape_cast %2 : vector<1x4x256xf32> to vector<4x256xf32>
    %4 = vector.shape_cast %1 : vector<4x256xf32> to vector<1x4x256xf32>
    tpu.vector_store %arg5[%c0_2, %c0_3, %c0_4], %4 {strides = array<i32>} : memref<1x8x256xf32, #tpu.memory_space<vmem>>, vector<1x4x256xf32>,
    %c0_5 = arith.constant 0 : index
    %c0_6 = arith.constant 0 : index
    %c0_7 = arith.constant 0 : index
    %5 = vector.load %arg2[%c0_5, %c0_6, %c0_7] : memref<1x4x256xf32, #tpu.memory_space<vmem>>, vector<1x4x256xf32>
    %6 = vector.shape_cast %5 : vector<1x4x256xf32> to vector<4x256xf32>
    %c0_8 = arith.constant 0 : index
    %c0_9 = arith.constant 0 : index
    %7 = vector.load %arg3[%c0_8, %c0_9] : memref<4x1xf32, #tpu.memory_space<vmem>>, vector<4x1xf32>
    %8 = vector.broadcast %7 : vector<4x1xf32> to vector<4x256xf32>
    %9 = arith.mulf %6, %8 : vector<4x256xf32>
    %c0_10 = arith.constant 0 : index
    %c0_11 = arith.constant 0 : index
    %10 = vector.load %arg4[%c0_10, %c0_11] : memref<4x1xf32, #tpu.memory_space<vmem>>, vector<4x1xf32>
    %11 = vector.broadcast %10 : vector<4x1xf32> to vector<4x256xf32>
    %12 = arith.addf %9, %11 : vector<4x256xf32>
    %c0_12 = arith.constant 0 : index
    %c4 = arith.constant 4 : index
    %c0_13 = arith.constant 0 : index
    %13 = vector.load %arg5[%c0_12, %c4, %c0_13] : memref<1x8x256xf32, #tpu.memory_space<vmem>>, vector<1x4x256xf32>
    %14 = vector.shape_cast %13 : vector<1x4x256xf32> to vector<4x256xf32>
    %15 = vector.shape_cast %12 : vector<4x256xf32> to vector<1x4x256xf32>
    tpu.vector_store %arg5[%c0_12, %c4, %c0_13], %15 {strides = array<i32>} : memref<1x8x256xf32, #tpu.memory_space<vmem>>, vector<1x4x256xf32>,
    return
  }
  func.func @transform_0(%arg0: i32) -> (i32, i32, i32) {
    %c0_i32 = arith.constant 0 : i32
    %c0_i32_0 = arith.constant 0 : i32
    %c0_i32_1 = arith.constant 0 : i32
    return %arg0, %c0_i32, %c0_i32_0 : i32, i32, i32
  }
  func.func @transform_1(%arg0: i32) -> (i32, i32, i32) {
    %c0_i32 = arith.constant 0 : i32
    %c0_i32_0 = arith.constant 0 : i32
    %c0_i32_1 = arith.constant 0 : i32
    return %arg0, %c0_i32, %c0_i32_0 : i32, i32, i32
  }
  func.func @transform_2(%arg0: i32) -> (i32, i32) {
    %c0_i32 = arith.constant 0 : i32
    %c0_i32_0 = arith.constant 0 : i32
    %c0_i32_1 = arith.constant 0 : i32
    return %c0_i32, %c0_i32_0 : i32, i32
  }
  func.func @transform_3(%arg0: i32) -> (i32, i32) {
    %c0_i32 = arith.constant 0 : i32
    %c0_i32_0 = arith.constant 0 : i32
    %c0_i32_1 = arith.constant 0 : i32
    return %c0_i32, %c0_i32_0 : i32, i32
  }
  func.func @transform_4(%arg0: i32) -> (i32, i32, i32) {
    %c0_i32 = arith.constant 0 : i32
    %c0_i32_0 = arith.constant 0 : i32
    %c0_i32_1 = arith.constant 0 : i32
    return %arg0, %c0_i32, %c0_i32_0 : i32, i32, i32
  }
}

</mosaic_0001>

<llo_original>
// kernel: unet_innermost_forward.3
$region0: #{unet_innermost_forward.3}
  #allocation0 [shape = 'u32[]', space=smem, size = 0x4, offset = 0x4, fixed_abs, tag = 'smem constant byte address 0x4 - core index']
  #allocation1 [shape = 'u32[72,128]{1,0:T(1,128)}', space=vmem, size = 0x9000, scoped, tag = 'internal scratch']
  %s0 = inlined_call_operand.vmem [shape: f32[2,4,256], index: 0, kind: input, shape index: {}]
  %s1 = inlined_call_operand.vmem [shape: f32[2,4,256], index: 1, kind: input, shape index: {}]
  %s2 = inlined_call_operand.vmem [shape: f32[4,1], index: 2, kind: input, shape index: {}]
  %s3 = inlined_call_operand.vmem [shape: f32[4,1], index: 3, kind: input, shape index: {}]
  %s4 = inlined_call_operand.vmem [shape: f32[2,8,256], index: 4, kind: output, shape index: {}]
  %s5 = sld [smem:[#allocation0]]
  $region49: #{unet_innermost_forward.3} parent=0
    _
  %s7 = ssub.s32 1, %s5
  %s8 = scalar_select 0, %s7, %s5
  loop: start=0, step=1, limit=4
  $region2: #{unet_innermost_forward.3} parent=0 // loop_pre_header
    _
  $region3: #{unet_innermost_forward.3} parent=0 // loop_header
    %s10 = sphi 0, %s14
    %p11 = scmp.ge.s32.totalorder %s10, 4
    %s20 = sphi 0, %s22
    %s23 = sphi 0, %s20
    %s24 = sphi 0, %s23
    %s40 = sphi 0, %s24
    %s46 = sphi 0, %s48
    %s49 = sphi 0, %s46
    %s50 = sphi 0, %s49
    %s66 = sphi 0, %s50
    %s70 = sphi 0, %s70
    %s72 = sphi 0, %s70
    %s73 = sphi 0, %s72
    %s87 = sphi 0, %s73
    %s91 = sphi 0, %s91
    %s93 = sphi 0, %s91
    %s94 = sphi 0, %s93
    %s108 = sphi 0, %s94
    %s114 = sphi 0, %s116
    %s117 = sphi 0, %s114
    %s118 = sphi 0, %s117
    %s134 = sphi 0, %s118
  $region4: #{unet_innermost_forward.3} parent=0 // loop_header_branch
    %13 = sbr.rel (%p11) target = $region8
  $region5: #{unet_innermost_forward.3} parent=0 // loop_body
    %s15 = ssub.s32 %s10, 1
    %s16 = ssub.s32 %s10, 2
    %s17 = sadd.s32 %s10, 1
    %s18 = ssub.s32 %s10, %s17
    %p19 = scmp.eq.s32.totalorder %s18, 0
    %s21 = sadd.s32 %s20, 1
    %s22 = scalar_select %p19, %s20, %s21
    %p25 = pneg %p19
    %p26 = scmp.eq.s32.totalorder %s10, 1
    %p27 = por %p25, %p26
    %p28 = scmp.ne.s32.totalorder %s20, %s23
    %p29 = scmp.eq.s32.totalorder %s10, 0
    %p30 = por %p28, %p29
    %p31 = scmp.ne.s32.totalorder %s20, %s23
    %p32 = scmp.eq.s32.totalorder %s15, 1
    %p33 = por %p31, %p32
    %p34 = scmp.ne.s32.totalorder %s23, %s24
    %p35 = scmp.eq.s32.totalorder %s15, 0
    %p36 = por %p34, %p35
    %p37 = scmp.ne.s32.totalorder %s23, %s24
    %p38 = scmp.eq.s32.totalorder %s16, 1
    %p39 = por %p37, %p38
    %p41 = scmp.ne.s32.totalorder %s24, %s40
    %p42 = scmp.eq.s32.totalorder %s16, 0
    %p43 = por %p41, %p42
    %s44 = ssub.s32 %s10, %s17
    %p45 = scmp.eq.s32.totalorder %s44, 0
    %s47 = sadd.s32 %s46, 1
    %s48 = scalar_select %p45, %s46, %s47
    %p51 = pneg %p45
    %p52 = scmp.eq.s32.totalorder %s10, 1
    %p53 = por %p51, %p52
    %p54 = scmp.ne.s32.totalorder %s46, %s49
    %p55 = scmp.eq.s32.totalorder %s10, 0
    %p56 = por %p54, %p55
    %p57 = scmp.ne.s32.totalorder %s46, %s49
    %p58 = scmp.eq.s32.totalorder %s15, 1
    %p59 = por %p57, %p58
    %p60 = scmp.ne.s32.totalorder %s49, %s50
    %p61 = scmp.eq.s32.totalorder %s15, 0
    %p62 = por %p60, %p61
    %p63 = scmp.ne.s32.totalorder %s49, %s50
    %p64 = scmp.eq.s32.totalorder %s16, 1
    %p65 = por %p63, %p64
    %p67 = scmp.ne.s32.totalorder %s50, %s66
    %p68 = scmp.eq.s32.totalorder %s16, 0
    %p69 = por %p67, %p68
    %s71 = sadd.s32 %s70, 1
    %p74 = scmp.eq.s32.totalorder %s10, 1
    %p75 = scmp.ne.s32.totalorder %s70, %s72
    %p76 = scmp.eq.s32.totalorder %s10, 0
    %p77 = por %p75, %p76
    %p78 = scmp.ne.s32.totalorder %s70, %s72
    %p79 = scmp.eq.s32.totalorder %s15, 1
    %p80 = por %p78, %p79
    %p81 = scmp.ne.s32.totalorder %s72, %s73
    %p82 = scmp.eq.s32.totalorder %s15, 0
    %p83 = por %p81, %p82
    %p84 = scmp.ne.s32.totalorder %s72, %s73
    %p85 = scmp.eq.s32.totalorder %s16, 1
    %p86 = por %p84, %p85
    %p88 = scmp.ne.s32.totalorder %s73, %s87
    %p89 = scmp.eq.s32.totalorder %s16, 0
    %p90 = por %p88, %p89
    %s92 = sadd.s32 %s91, 1
    %p95 = scmp.eq.s32.totalorder %s10, 1
    %p96 = scmp.ne.s32.totalorder %s91, %s93
    %p97 = scmp.eq.s32.totalorder %s10, 0
    %p98 = por %p96, %p97
    %p99 = scmp.ne.s32.totalorder %s91, %s93
    %p100 = scmp.eq.s32.totalorder %s15, 1
    %p101 = por %p99, %p100
    %p102 = scmp.ne.s32.totalorder %s93, %s94
    %p103 = scmp.eq.s32.totalorder %s15, 0
    %p104 = por %p102, %p103
    %p105 = scmp.ne.s32.totalorder %s93, %s94
    %p106 = scmp.eq.s32.totalorder %s16, 1
    %p107 = por %p105, %p106
    %p109 = scmp.ne.s32.totalorder %s94, %s108
    %p110 = scmp.eq.s32.totalorder %s16, 0
    %p111 = por %p109, %p110
    %s112 = ssub.s32 %s10, %s17
    %p113 = scmp.eq.s32.totalorder %s112, 0
    %s115 = sadd.s32 %s114, 1
    %s116 = scalar_select %p113, %s114, %s115
    %p119 = pneg %p113
    %p120 = scmp.eq.s32.totalorder %s10, 1
    %p121 = por %p119, %p120
    %p122 = scmp.ne.s32.totalorder %s114, %s117
    %p123 = scmp.eq.s32.totalorder %s10, 0
    %p124 = por %p122, %p123
    %p125 = scmp.ne.s32.totalorder %s114, %s117
    %p126 = scmp.eq.s32.totalorder %s15, 1
    %p127 = por %p125, %p126
    %p128 = scmp.ne.s32.totalorder %s117, %s118
    %p129 = scmp.eq.s32.totalorder %s15, 0
    %p130 = por %p128, %p129
    %p131 = scmp.ne.s32.totalorder %s117, %s118
    %p132 = scmp.eq.s32.totalorder %s16, 1
    %p133 = por %p131, %p132
    %p135 = scmp.ne.s32.totalorder %s118, %s134
    %p136 = scmp.eq.s32.totalorder %s16, 0
    %p137 = por %p135, %p136
    %p138 = scmp.le.s32.totalorder 1, %s10
    %p139 = scmp.lt.s32.totalorder %s10, 3
    %p140 = pnand %p138, %p139
    %p141 = pneg %p140
    // Predicated region
    $region9: #{unet_innermost_forward.3} parent=5 // pred_check
      _
    $region10: #{unet_innermost_forward.3} parent=5 // pred_check_branch
      %143 = sbr.rel (%p140) target = $region12
    $region11: #{unet_innermost_forward.3} parent=5 // pred_region
      %s144 = ssub.s32 %s10, 1
      // Predicated region
      $region13: #{unet_innermost_forward.3} parent=11 // pred_check
        %p145 = pneg %p83
      $region14: #{unet_innermost_forward.3} parent=11 // pred_check_branch
        %147 = sbr.rel (%p145) target = $region16
      $region15: #{unet_innermost_forward.3} parent=11 // pred_region
        _
      $region16: #{unet_innermost_forward.3} parent=11 // pred_fallthru
        _
      // Predicated region
      $region17: #{unet_innermost_forward.3} parent=11 // pred_check
        %p148 = pneg %p104
      $region18: #{unet_innermost_forward.3} parent=11 // pred_check_branch
        %150 = sbr.rel (%p148) target = $region20
      $region19: #{unet_innermost_forward.3} parent=11 // pred_region
        _
      $region20: #{unet_innermost_forward.3} parent=11 // pred_fallthru
        _
    $region12: #{unet_innermost_forward.3} parent=5 // pred_fallthru
      _
    %p151 = scmp.lt.s32.totalorder %s10, 2
    // Predicated region
    $region21: #{unet_innermost_forward.3} parent=5 // pred_check
      %p152 = pneg %p151
    $region22: #{unet_innermost_forward.3} parent=5 // pred_check_branch
      %154 = sbr.rel (%p152) target = $region24
    $region23: #{unet_innermost_forward.3} parent=5 // pred_region
      // Predicated region
      $region25: #{unet_innermost_forward.3} parent=23 // pred_check
        %p155 = pneg %p30
      $region26: #{unet_innermost_forward.3} parent=23 // pred_check_branch
        %157 = sbr.rel (%p155) target = $region28
      $region27: #{unet_innermost_forward.3} parent=23 // pred_region
        %p158 = scmp.lt.s32.totalorder %s10, 1
        %s159 = scalar_select %p158, %s10, 1
        %s160 = smul.addr %s159, 2
        %s161 = smul.addr %s160, 4
        %s162 = scalar_lea.vmem %s0, %s161
      $region28: #{unet_innermost_forward.3} parent=23 // pred_fallthru
        _
      // Predicated region
      $region29: #{unet_innermost_forward.3} parent=23 // pred_check
        %p163 = pneg %p56
      $region30: #{unet_innermost_forward.3} parent=23 // pred_check_branch
        %165 = sbr.rel (%p163) target = $region32
      $region31: #{unet_innermost_forward.3} parent=23 // pred_region
        %p166 = scmp.lt.s32.totalorder %s10, 1
        %s167 = scalar_select %p166, %s10, 1
        %s168 = smul.addr %s167, 2
        %s169 = smul.addr %s168, 4
        %s170 = scalar_lea.vmem %s1, %s169
      $region32: #{unet_innermost_forward.3} parent=23 // pred_fallthru
        _
    $region24: #{unet_innermost_forward.3} parent=5 // pred_fallthru
      _
    %p171 = scmp.le.s32.totalorder 1, %s10
    %p172 = scmp.lt.s32.totalorder %s10, 3
    %p173 = pnand %p171, %p172
    %p174 = pneg %p173
    // Predicated region
    $region33: #{unet_innermost_forward.3} parent=5 // pred_check
      _
    $region34: #{unet_innermost_forward.3} parent=5 // pred_check_branch
      %176 = sbr.rel (%p173) target = $region36
    $region35: #{unet_innermost_forward.3} parent=5 // pred_region
      %s177 = ssub.s32 %s10, 1
      %p178 = scmp.lt.s32.totalorder %s15, 1
      %s179 = scalar_select %p178, %s15, 1
      %s180 = smul.addr %s179, 2
      %s181 = smul.addr %s180, 4
      %s182 = scalar_lea.vmem %s0, %s181
      %p183 = pneg %p36
      %p184 = pneg %p33
      %p185 = scmp.lt.s32.totalorder %s15, 1
      %s186 = scalar_select %p185, %s15, 1
      %s187 = smul.addr %s186, 2
      %s188 = smul.addr %s187, 4
      %s189 = scalar_lea.vmem %s1, %s188
      %p190 = pneg %p62
      %p191 = pneg %p59
      %p192 = pneg %p83
      %p193 = pneg %p80
      %p194 = pneg %p104
      %p195 = pneg %p101
      %p196 = pneg %p130
      %p197 = pneg %p127
      %p198 = scmp.lt.s32.totalorder %s15, 1
      %s199 = scalar_select %p198, %s15, 1
      %s200 = smul.addr %s199, 2
      %s201 = smul.addr %s200, 8
      %s202 = scalar_lea.vmem %s4, %s201
      %p203 = scmp.lt.s32.totalorder %s15, 1
      %s204 = scalar_select %p203, %s15, 1
      %s205 = smul.addr %s204, 2
      %s206 = smul.addr %s205, 4
      %s207 = scalar_lea.vmem %s0, %s206
      %p208 = scmp.lt.s32.totalorder %s15, 1
      %s209 = scalar_select %p208, %s15, 1
      %s210 = smul.addr %s209, 2
      %s211 = smul.addr %s210, 4
      %s212 = scalar_lea.vmem %s1, %s211
      %p213 = scmp.lt.s32.totalorder %s15, 1
      %s214 = scalar_select %p213, %s15, 1
      %s215 = smul.addr %s214, 2
      %s216 = smul.addr %s215, 8
      %s217 = scalar_lea.vmem %s4, %s216
      %v218 = vld [vmem:[%s207] sm:$0xff]
      %220 = vst [vmem:[#allocation1] ss:$2 sm:$0xff] %v218
      %v221 = vld.sshfl [vmem:[#allocation1] sm:$0xff pattern:$0x75316420]
      %v222 = vld.sshfl [vmem:[#allocation1 + $0x8] sm:$0xff pattern:$0x75316420]
      %225 = vst [vmem:[%s217] sm:$0xf] %v221
      %226 = vst [vmem:[%s217 + $0x8] sm:$0xf] %v222
      %v227 = vld [vmem:[%s212] sm:$0xff]
      %v228 = vld [vmem:[%s2] sm:$0xf]
      %230 = vset.pattern.permute.xlu0 0
      %231 = vperm.xlu0 %230, %v228
      %v232 = vpop.permute.xlu0 %231
      %v234 = vunpack.c.l.s4 839922192
      %v235 = vunpack.c.0.s8 %v234
      %v236 = vperm.slane %v232, %v235
      %v238 = vmul.f32 %v227, %v236
      %v239 = vld [vmem:[%s3] sm:$0xf]
      %241 = vset.pattern.permute.xlu0 0
      %242 = vperm.xlu0 %241, %v239
      %v243 = vpop.permute.xlu0 %242
      %v245 = vunpack.c.l.s4 839922192
      %v246 = vunpack.c.0.s8 %v245
      %v247 = vperm.slane %v243, %v246
      %v249 = vadd.f32 %v238, %v247
      %s251 = scalar_lea.vmem [#allocation1], 1
      %252 = vst [vmem:[%s251] ss:$2 sm:$0xff] %v249
      %v253 = vld.sshfl [vmem:[#allocation1] sm:$0xff pattern:$0x75316420]
      %v254 = vld.sshfl [vmem:[#allocation1 + $0x8] sm:$0xff pattern:$0x75316420]
      %257 = vst [vmem:[%s217] sm:$0xf0] %v253
      %258 = vst [vmem:[%s217 + $0x8] sm:$0xf0] %v254
      %p259 = scmp.lt.s32.totalorder %s15, 1
      %s260 = scalar_select %p259, %s15, 1
      %s261 = smul.addr %s260, 2
      %s262 = smul.addr %s261, 8
      %s263 = scalar_lea.vmem %s4, %s262
      // Predicated region
      $region37: #{unet_innermost_forward.3} parent=35 // pred_check
        %p264 = pneg %p127
      $region38: #{unet_innermost_forward.3} parent=35 // pred_check_branch
        %266 = sbr.rel (%p264) target = $region40
      $region39: #{unet_innermost_forward.3} parent=35 // pred_region
        _
      $region40: #{unet_innermost_forward.3} parent=35 // pred_fallthru
        _
    $region36: #{unet_innermost_forward.3} parent=5 // pred_fallthru
      _
    %p267 = scmp.le.s32.totalorder 2, %s10
    // Predicated region
    $region41: #{unet_innermost_forward.3} parent=5 // pred_check
      %p268 = pneg %p267
    $region42: #{unet_innermost_forward.3} parent=5 // pred_check_branch
      %270 = sbr.rel (%p268) target = $region44
    $region43: #{unet_innermost_forward.3} parent=5 // pred_region
      %s271 = ssub.s32 %s10, 2
      // Predicated region
      $region45: #{unet_innermost_forward.3} parent=43 // pred_check
        %p272 = pneg %p133
      $region46: #{unet_innermost_forward.3} parent=43 // pred_check_branch
        %274 = sbr.rel (%p272) target = $region48
      $region47: #{unet_innermost_forward.3} parent=43 // pred_region
        %p275 = scmp.lt.s32.totalorder %s16, 1
        %s276 = scalar_select %p275, %s16, 1
        %s277 = smul.addr %s276, 2
        %s278 = smul.addr %s277, 8
        %s279 = scalar_lea.vmem %s4, %s278
      $region48: #{unet_innermost_forward.3} parent=43 // pred_fallthru
        _
    $region44: #{unet_innermost_forward.3} parent=5 // pred_fallthru
      _
  $region6: #{unet_innermost_forward.3} parent=0 // loop_footer
    %s14 = sadd.s32 1, %s10
  $region7: #{unet_innermost_forward.3} parent=0 // loop_footer_branch
    %9 = sbr.rel target = $region3
  $region8: #{unet_innermost_forward.3} parent=0 // loop_exit
    _

// kernel: unet_innermost_forward.2
$region0: #{unet_innermost_forward.2}
  #allocation0 [shape = 'u32[]', space=smem, size = 0x4, offset = 0x4, fixed_abs, tag = 'smem constant byte address 0x4 - core index']
  #allocation1 [shape = 'u32[72,128]{1,0:T(1,128)}', space=vmem, size = 0x9000, scoped, tag = 'internal scratch']
  #allocation2 [shape = 'f32[10,10,8]{2,1,0:T(8,128)}', space=vmem, size = 0x14000, scoped, tag = 'scratch operand']
  %s0 = inlined_call_operand.vmem [shape: f32[2,9,9,16], index: 0, kind: input, shape index: {}]
  %s1 = inlined_call_operand.vmem [shape: f32[4,16,8], index: 1, kind: input, shape index: {}]
  %s2 = inlined_call_operand.vmem [shape: f32[4,4,4,8], index: 2, kind: input, shape index: {}]
  %s3 = inlined_call_operand.vmem [shape: f32[4,64,256], index: 3, kind: input, shape index: {}]
  %s4 = inlined_call_operand.vmem [shape: f32[2,4,256], index: 4, kind: output, shape index: {0}]
  %s5 = inlined_call_operand.vmem [shape: f32[2,4,1], index: 5, kind: output, shape index: {1}]
  %s6 = inlined_call_operand.vmem [shape: f32[2,4,1], index: 6, kind: output, shape index: {2}]
  %7 = xla_tuple %s4, %s5, %s6
  %s8 = sld [smem:[#allocation0]]
  $region65: #{unet_innermost_forward.2} parent=0
    _
  %s10 = ssub.s32 1, %s8
  %s11 = scalar_select 0, %s10, %s8
  loop: start=0, step=1, limit=4
  $region2: #{unet_innermost_forward.2} parent=0 // loop_pre_header
    _
  $region3: #{unet_innermost_forward.2} parent=0 // loop_header
    %s13 = sphi 0, %s17
    %p14 = scmp.ge.s32.totalorder %s13, 4
    %s23 = sphi 0, %s25
    %s26 = sphi 0, %s23
    %s27 = sphi 0, %s26
    %s43 = sphi 0, %s27
    %s47 = sphi 0, %s47
    %s49 = sphi 0, %s47
    %s50 = sphi 0, %s49
    %s64 = sphi 0, %s50
    %s68 = sphi 0, %s68
    %s70 = sphi 0, %s68
    %s71 = sphi 0, %s70
    %s85 = sphi 0, %s71
    %s89 = sphi 0, %s89
    %s91 = sphi 0, %s89
    %s92 = sphi 0, %s91
    %s106 = sphi 0, %s92
    %s112 = sphi 0, %s114
    %s115 = sphi 0, %s112
    %s116 = sphi 0, %s115
    %s132 = sphi 0, %s116
    %s138 = sphi 0, %s140
    %s141 = sphi 0, %s138
    %s142 = sphi 0, %s141
    %s158 = sphi 0, %s142
    %s164 = sphi 0, %s166
    %s167 = sphi 0, %s164
    %s168 = sphi 0, %s167
    %s184 = sphi 0, %s168
  $region4: #{unet_innermost_forward.2} parent=0 // loop_header_branch
    %16 = sbr.rel (%p14) target = $region8
  $region5: #{unet_innermost_forward.2} parent=0 // loop_body
    %s18 = ssub.s32 %s13, 1
    %s19 = ssub.s32 %s13, 2
    %s20 = sadd.s32 %s13, 1
    %s21 = ssub.s32 %s13, %s20
    %p22 = scmp.eq.s32.totalorder %s21, 0
    %s24 = sadd.s32 %s23, 1
    %s25 = scalar_select %p22, %s23, %s24
    %p28 = pneg %p22
    %p29 = scmp.eq.s32.totalorder %s13, 1
    %p30 = por %p28, %p29
    %p31 = scmp.ne.s32.totalorder %s23, %s26
    %p32 = scmp.eq.s32.totalorder %s13, 0
    %p33 = por %p31, %p32
    %p34 = scmp.ne.s32.totalorder %s23, %s26
    %p35 = scmp.eq.s32.totalorder %s18, 1
    %p36 = por %p34, %p35
    %p37 = scmp.ne.s32.totalorder %s26, %s27
    %p38 = scmp.eq.s32.totalorder %s18, 0
    %p39 = por %p37, %p38
    %p40 = scmp.ne.s32.totalorder %s26, %s27
    %p41 = scmp.eq.s32.totalorder %s19, 1
    %p42 = por %p40, %p41
    %p44 = scmp.ne.s32.totalorder %s27, %s43
    %p45 = scmp.eq.s32.totalorder %s19, 0
    %p46 = por %p44, %p45
    %s48 = sadd.s32 %s47, 1
    %p51 = scmp.eq.s32.totalorder %s13, 1
    %p52 = scmp.ne.s32.totalorder %s47, %s49
    %p53 = scmp.eq.s32.totalorder %s13, 0
    %p54 = por %p52, %p53
    %p55 = scmp.ne.s32.totalorder %s47, %s49
    %p56 = scmp.eq.s32.totalorder %s18, 1
    %p57 = por %p55, %p56
    %p58 = scmp.ne.s32.totalorder %s49, %s50
    %p59 = scmp.eq.s32.totalorder %s18, 0
    %p60 = por %p58, %p59
    %p61 = scmp.ne.s32.totalorder %s49, %s50
    %p62 = scmp.eq.s32.totalorder %s19, 1
    %p63 = por %p61, %p62
    %p65 = scmp.ne.s32.totalorder %s50, %s64
    %p66 = scmp.eq.s32.totalorder %s19, 0
    %p67 = por %p65, %p66
    %s69 = sadd.s32 %s68, 1
    %p72 = scmp.eq.s32.totalorder %s13, 1
    %p73 = scmp.ne.s32.totalorder %s68, %s70
    %p74 = scmp.eq.s32.totalorder %s13, 0
    %p75 = por %p73, %p74
    %p76 = scmp.ne.s32.totalorder %s68, %s70
    %p77 = scmp.eq.s32.totalorder %s18, 1
    %p78 = por %p76, %p77
    %p79 = scmp.ne.s32.totalorder %s70, %s71
    %p80 = scmp.eq.s32.totalorder %s18, 0
    %p81 = por %p79, %p80
    %p82 = scmp.ne.s32.totalorder %s70, %s71
    %p83 = scmp.eq.s32.totalorder %s19, 1
    %p84 = por %p82, %p83
    %p86 = scmp.ne.s32.totalorder %s71, %s85
    %p87 = scmp.eq.s32.totalorder %s19, 0
    %p88 = por %p86, %p87
    %s90 = sadd.s32 %s89, 1
    %p93 = scmp.eq.s32.totalorder %s13, 1
    %p94 = scmp.ne.s32.totalorder %s89, %s91
    %p95 = scmp.eq.s32.totalorder %s13, 0
    %p96 = por %p94, %p95
    %p97 = scmp.ne.s32.totalorder %s89, %s91
    %p98 = scmp.eq.s32.totalorder %s18, 1
    %p99 = por %p97, %p98
    %p100 = scmp.ne.s32.totalorder %s91, %s92
    %p101 = scmp.eq.s32.totalorder %s18, 0
    %p102 = por %p100, %p101
    %p103 = scmp.ne.s32.totalorder %s91, %s92
    %p104 = scmp.eq.s32.totalorder %s19, 1
    %p105 = por %p103, %p104
    %p107 = scmp.ne.s32.totalorder %s92, %s106
    %p108 = scmp.eq.s32.totalorder %s19, 0
    %p109 = por %p107, %p108
    %s110 = ssub.s32 %s13, %s20
    %p111 = scmp.eq.s32.totalorder %s110, 0
    %s113 = sadd.s32 %s112, 1
    %s114 = scalar_select %p111, %s112, %s113
    %p117 = pneg %p111
    %p118 = scmp.eq.s32.totalorder %s13, 1
    %p119 = por %p117, %p118
    %p120 = scmp.ne.s32.totalorder %s112, %s115
    %p121 = scmp.eq.s32.totalorder %s13, 0
    %p122 = por %p120, %p121
    %p123 = scmp.ne.s32.totalorder %s112, %s115
    %p124 = scmp.eq.s32.totalorder %s18, 1
    %p125 = por %p123, %p124
    %p126 = scmp.ne.s32.totalorder %s115, %s116
    %p127 = scmp.eq.s32.totalorder %s18, 0
    %p128 = por %p126, %p127
    %p129 = scmp.ne.s32.totalorder %s115, %s116
    %p130 = scmp.eq.s32.totalorder %s19, 1
    %p131 = por %p129, %p130
    %p133 = scmp.ne.s32.totalorder %s116, %s132
    %p134 = scmp.eq.s32.totalorder %s19, 0
    %p135 = por %p133, %p134
    %s136 = ssub.s32 %s13, %s20
    %p137 = scmp.eq.s32.totalorder %s136, 0
    %s139 = sadd.s32 %s138, 1
    %s140 = scalar_select %p137, %s138, %s139
    %p143 = pneg %p137
    %p144 = scmp.eq.s32.totalorder %s13, 1
    %p145 = por %p143, %p144
    %p146 = scmp.ne.s32.totalorder %s138, %s141
    %p147 = scmp.eq.s32.totalorder %s13, 0
    %p148 = por %p146, %p147
    %p149 = scmp.ne.s32.totalorder %s138, %s141
    %p150 = scmp.eq.s32.totalorder %s18, 1
    %p151 = por %p149, %p150
    %p152 = scmp.ne.s32.totalorder %s141, %s142
    %p153 = scmp.eq.s32.totalorder %s18, 0
    %p154 = por %p152, %p153
    %p155 = scmp.ne.s32.totalorder %s141, %s142
    %p156 = scmp.eq.s32.totalorder %s19, 1
    %p157 = por %p155, %p156
    %p159 = scmp.ne.s32.totalorder %s142, %s158
    %p160 = scmp.eq.s32.totalorder %s19, 0
    %p161 = por %p159, %p160
    %s162 = ssub.s32 %s13, %s20
    %p163 = scmp.eq.s32.totalorder %s162, 0
    %s165 = sadd.s32 %s164, 1
    %s166 = scalar_select %p163, %s164, %s165
    %p169 = pneg %p163
    %p170 = scmp.eq.s32.totalorder %s13, 1
    %p171 = por %p169, %p170
    %p172 = scmp.ne.s32.totalorder %s164, %s167
    %p173 = scmp.eq.s32.totalorder %s13, 0
    %p174 = por %p172, %p173
    %p175 = scmp.ne.s32.totalorder %s164, %s167
    %p176 = scmp.eq.s32.totalorder %s18, 1
    %p177 = por %p175, %p176
    %p178 = scmp.ne.s32.totalorder %s167, %s168
    %p179 = scmp.eq.s32.totalorder %s18, 0
    %p180 = por %p178, %p179
    %p181 = scmp.ne.s32.totalorder %s167, %s168
    %p182 = scmp.eq.s32.totalorder %s19, 1
    %p183 = por %p181, %p182
    %p185 = scmp.ne.s32.totalorder %s168, %s184
    %p186 = scmp.eq.s32.totalorder %s19, 0
    %p187 = por %p185, %p186
    %p188 = scmp.le.s32.totalorder 1, %s13
    %p189 = scmp.lt.s32.totalorder %s13, 3
    %p190 = pnand %p188, %p189
    %p191 = pneg %p190
    // Predicated region
    $region9: #{unet_innermost_forward.2} parent=5 // pred_check
      _
    $region10: #{unet_innermost_forward.2} parent=5 // pred_check_branch
      %193 = sbr.rel (%p190) target = $region12
    $region11: #{unet_innermost_forward.2} parent=5 // pred_region
      %s194 = ssub.s32 %s13, 1
      // Predicated region
      $region13: #{unet_innermost_forward.2} parent=11 // pred_check
        %p195 = pneg %p60
      $region14: #{unet_innermost_forward.2} parent=11 // pred_check_branch
        %197 = sbr.rel (%p195) target = $region16
      $region15: #{unet_innermost_forward.2} parent=11 // pred_region
        _
      $region16: #{unet_innermost_forward.2} parent=11 // pred_fallthru
        _
      // Predicated region
      $region17: #{unet_innermost_forward.2} parent=11 // pred_check
        %p198 = pneg %p81
      $region18: #{unet_innermost_forward.2} parent=11 // pred_check_branch
        %200 = sbr.rel (%p198) target = $region20
      $region19: #{unet_innermost_forward.2} parent=11 // pred_region
        _
      $region20: #{unet_innermost_forward.2} parent=11 // pred_fallthru
        _
      // Predicated region
      $region21: #{unet_innermost_forward.2} parent=11 // pred_check
        %p201 = pneg %p102
      $region22: #{unet_innermost_forward.2} parent=11 // pred_check_branch
        %203 = sbr.rel (%p201) target = $region24
      $region23: #{unet_innermost_forward.2} parent=11 // pred_region
        _
      $region24: #{unet_innermost_forward.2} parent=11 // pred_fallthru
        _
    $region12: #{unet_innermost_forward.2} parent=5 // pred_fallthru
      _
    %p204 = scmp.lt.s32.totalorder %s13, 2
    // Predicated region
    $region25: #{unet_innermost_forward.2} parent=5 // pred_check
      %p205 = pneg %p204
    $region26: #{unet_innermost_forward.2} parent=5 // pred_check_branch
      %207 = sbr.rel (%p205) target = $region28
    $region27: #{unet_innermost_forward.2} parent=5 // pred_region
      // Predicated region
      $region29: #{unet_innermost_forward.2} parent=27 // pred_check
        %p208 = pneg %p33
      $region30: #{unet_innermost_forward.2} parent=27 // pred_check_branch
        %210 = sbr.rel (%p208) target = $region32
      $region31: #{unet_innermost_forward.2} parent=27 // pred_region
        %p211 = scmp.lt.s32.totalorder %s13, 1
        %s212 = scalar_select %p211, %s13, 1
        %s213 = smul.addr %s212, 18
        %s214 = smul.addr %s213, 8
        %s215 = scalar_lea.vmem %s0, %s214
      $region32: #{unet_innermost_forward.2} parent=27 // pred_fallthru
        _
    $region28: #{unet_innermost_forward.2} parent=5 // pred_fallthru
      _
    %p216 = scmp.le.s32.totalorder 1, %s13
    %p217 = scmp.lt.s32.totalorder %s13, 3
    %p218 = pnand %p216, %p217
    %p219 = pneg %p218
    // Predicated region
    $region33: #{unet_innermost_forward.2} parent=5 // pred_check
      _
    $region34: #{unet_innermost_forward.2} parent=5 // pred_check_branch
      %221 = sbr.rel (%p218) target = $region36
    $region35: #{unet_innermost_forward.2} parent=5 // pred_region
      %s222 = ssub.s32 %s13, 1
      %p223 = scmp.lt.s32.totalorder %s18, 1
      %s224 = scalar_select %p223, %s18, 1
      %s225 = smul.addr %s224, 18
      %s226 = smul.addr %s225, 8
      %s227 = scalar_lea.vmem %s0, %s226
      %p228 = pneg %p39
      %p229 = pneg %p36
      %p230 = pneg %p60
      %p231 = pneg %p57
      %p232 = pneg %p81
      %p233 = pneg %p78
      %p234 = pneg %p102
      %p235 = pneg %p99
      %p236 = pneg %p128
      %p237 = pneg %p125
      %p238 = scmp.lt.s32.totalorder %s18, 1
      %s239 = scalar_select %p238, %s18, 1
      %s240 = smul.addr %s239, 2
      %s241 = smul.addr %s240, 4
      %s242 = scalar_lea.vmem %s4, %s241
      %p243 = pneg %p154
      %p244 = pneg %p151
      %p245 = scmp.lt.s32.totalorder %s18, 1
      %s246 = scalar_select %p245, %s18, 1
      %s247 = smul.addr %s246, 4
      %s248 = scalar_lea.vmem %s5, %s247
      %p249 = pneg %p180
      %p250 = pneg %p177
      %p251 = scmp.lt.s32.totalorder %s18, 1
      %s252 = scalar_select %p251, %s18, 1
      %s253 = smul.addr %s252, 4
      %s254 = scalar_lea.vmem %s6, %s253
      %p255 = scmp.lt.s32.totalorder %s18, 1
      %s256 = scalar_select %p255, %s18, 1
      %s257 = smul.addr %s256, 18
      %s258 = smul.addr %s257, 8
      %s259 = scalar_lea.vmem %s0, %s258
      %p260 = scmp.lt.s32.totalorder %s18, 1
      %s261 = scalar_select %p260, %s18, 1
      %s262 = smul.addr %s261, 2
      %s263 = smul.addr %s262, 4
      %s264 = scalar_lea.vmem %s4, %s263
      %p265 = scmp.lt.s32.totalorder %s18, 1
      %s266 = scalar_select %p265, %s18, 1
      %s267 = smul.addr %s266, 4
      %s268 = scalar_lea.vmem %s5, %s267
      %p269 = scmp.lt.s32.totalorder %s18, 1
      %s270 = scalar_select %p269, %s18, 1
      %s271 = smul.addr %s270, 4
      %s272 = scalar_lea.vmem %s6, %s271
      %v273 = vld [vmem:[%s259] sm:$0xff]
      %v274 = vld [vmem:[%s259 + $0x10] sm:$0xff]
      %v275 = vld [vmem:[%s259 + $0x20] sm:$0xff]
      %v276 = vld [vmem:[%s259 + $0x30] sm:$0xff]
      %v277 = vld [vmem:[%s259 + $0x40] sm:$0xff]
      %v278 = vld [vmem:[%s259 + $0x50] sm:$0xff]
      %v279 = vld [vmem:[%s259 + $0x60] sm:$0xff]
      %v280 = vld [vmem:[%s259 + $0x70] sm:$0xff]
      %vm281 = vcmp.gt.f32.partialorder %v273, 0.0
      %vm282 = vcmp.gt.f32.partialorder %v274, 0.0
      %vm283 = vcmp.gt.f32.partialorder %v275, 0.0
      %vm284 = vcmp.gt.f32.partialorder %v276, 0.0
      %vm285 = vcmp.gt.f32.partialorder %v277, 0.0
      %vm286 = vcmp.gt.f32.partialorder %v278, 0.0
      %vm287 = vcmp.gt.f32.partialorder %v279, 0.0
      %vm288 = vcmp.gt.f32.partialorder %v280, 0.0
      %v289 = vmul.f32 %v273, 0.2
      %v290 = vmul.f32 %v274, 0.2
      %v291 = vmul.f32 %v275, 0.2
      %v292 = vmul.f32 %v276, 0.2
      %v293 = vmul.f32 %v277, 0.2
      %v294 = vmul.f32 %v278, 0.2
      %v295 = vmul.f32 %v279, 0.2
      %v296 = vmul.f32 %v280, 0.2
      %v297 = vsel %vm281, %v273, %v289
      %v298 = vsel %vm282, %v274, %v290
      %v299 = vsel %vm283, %v275, %v291
      %v300 = vsel %vm284, %v276, %v292
      %v301 = vsel %vm285, %v277, %v293
      %v302 = vsel %vm286, %v278, %v294
      %v303 = vsel %vm287, %v279, %v295
      %v304 = vsel %vm288, %v280, %v296
      %v305 = vld [vmem:[%s1] sm:$0xff]
      %v306 = vld [vmem:[%s1 + $0x8] sm:$0xff]
      %v307 = vld [vmem:[%s259 + $0x1] sm:$0xff]
      %v308 = vld [vmem:[%s259 + $0x11] sm:$0xff]
      %v309 = vld [vmem:[%s259 + $0x21] sm:$0xff]
      %v310 = vld [vmem:[%s259 + $0x31] sm:$0xff]
      %v311 = vld [vmem:[%s259 + $0x41] sm:$0xff]
      %v312 = vld [vmem:[%s259 + $0x51] sm:$0xff]
      %v313 = vld [vmem:[%s259 + $0x61] sm:$0xff]
      %v314 = vld [vmem:[%s259 + $0x71] sm:$0xff]
      %vm315 = vcmp.gt.f32.partialorder %v307, 0.0
      %vm316 = vcmp.gt.f32.partialorder %v308, 0.0
      %vm317 = vcmp.gt.f32.partialorder %v309, 0.0
      %vm318 = vcmp.gt.f32.partialorder %v310, 0.0
      %vm319 = vcmp.gt.f32.partialorder %v311, 0.0
      %vm320 = vcmp.gt.f32.partialorder %v312, 0.0
      %vm321 = vcmp.gt.f32.partialorder %v313, 0.0
      %vm322 = vcmp.gt.f32.partialorder %v314, 0.0
      %v323 = vmul.f32 %v307, 0.2
      %v324 = vmul.f32 %v308, 0.2
      %v325 = vmul.f32 %v309, 0.2
      %v326 = vmul.f32 %v310, 0.2
      %v327 = vmul.f32 %v311, 0.2
      %v328 = vmul.f32 %v312, 0.2
      %v329 = vmul.f32 %v313, 0.2
      %v330 = vmul.f32 %v314, 0.2
      %v331 = vsel %vm315, %v307, %v323
      %v332 = vsel %vm316, %v308, %v324
      %v333 = vsel %vm317, %v309, %v325
      %v334 = vsel %vm318, %v310, %v326
      %v335 = vsel %vm319, %v311, %v327
      %v336 = vsel %vm320, %v312, %v328
      %v337 = vsel %vm321, %v313, %v329
      %v338 = vsel %vm322, %v314, %v330
      %s339 = scalar_lea.vmem %s1, 16
      %v340 = vld [vmem:[%s339] sm:$0xff]
      %v341 = vld [vmem:[%s339 + $0x8] sm:$0xff]
      %vm342 = vcmask 130048
      %v344 = vsel %vm342, %v331, 0
      %v347 = vsel %vm342, %v332, 0
      %v350 = vsel %vm342, %v333, 0
      %v353 = vsel %vm342, %v334, 0
      %v356 = vsel %vm342, %v335, 0
      %v359 = vsel %vm342, %v336, 0
      %v362 = vsel %vm342, %v337, 0
      %v365 = vsel %vm342, %v338, 0
      %367 = vmatpush.msra.mxu0 0.0
      %368 = vmatpush.msra.mxu0 0.0
      %369 = vmatpush.msra.mxu0 0.0
      %370 = vmatpush.msra.mxu0 0.0
      %371 = vmatpush.msra.mxu0 0.0
      %372 = vmatpush.msra.mxu0 0.0
      %373 = vmatpush.msra.mxu0 0.0
      %374 = vmatpush.msra.mxu0 0.0
      %375 = vmatpush.msra.mxu0 0.0
      %376 = vmatpush.msra.mxu0 0.0
      %377 = vmatpush.msra.mxu0 0.0
      %378 = vmatpush.msra.mxu0 0.0
      %379 = vmatpush.msra.mxu0 0.0
      %380 = vmatpush.msra.mxu0 0.0
      %381 = vmatpush.msra.mxu0 %v341
      %382 = vmatpush.msra.mxu0 %v340
      %383 = vmatmul.f32.gmra.mxu0 %v344
      %v384 = vpop.f32.mrf.mxu0
      %v385 = vadd.f32 0.0, %v384
      %386 = vmatmul.f32.gmra.mxu0 %v347
      %v387 = vpop.f32.mrf.mxu0
      %v388 = vadd.f32 0.0, %v387
      %389 = vmatmul.f32.gmra.mxu0 %v350
      %v390 = vpop.f32.mrf.mxu0
      %v391 = vadd.f32 0.0, %v390
      %392 = vmatmul.f32.gmra.mxu0 %v353
      %v393 = vpop.f32.mrf.mxu0
      %v394 = vadd.f32 0.0, %v393
      %395 = vmatmul.f32.gmra.mxu0 %v356
      %v396 = vpop.f32.mrf.mxu0
      %v397 = vadd.f32 0.0, %v396
      %398 = vmatmul.f32.gmra.mxu0 %v359
      %v399 = vpop.f32.mrf.mxu0
      %v400 = vadd.f32 0.0, %v399
      %401 = vmatmul.f32.gmra.mxu0 %v362
      %v402 = vpop.f32.mrf.mxu0
      %v403 = vadd.f32 0.0, %v402
      %404 = vmatmul.f32.gmra.mxu0 %v365
      %v405 = vpop.f32.mrf.mxu0
      %v406 = vadd.f32 0.0, %v405
      %407 = vdwg.mxu0
      %v409 = vsel %vm342, %v297, 0
      %v412 = vsel %vm342, %v298, 0
      %v415 = vsel %vm342, %v299, 0
      %v418 = vsel %vm342, %v300, 0
      %v421 = vsel %vm342, %v301, 0
      %v424 = vsel %vm342, %v302, 0
      %v427 = vsel %vm342, %v303, 0
      %v430 = vsel %vm342, %v304, 0
      %432 = vmatpush.msra.mxu0 0.0
      %433 = vmatpush.msra.mxu0 0.0
      %434 = vmatpush.msra.mxu0 0.0
      %435 = vmatpush.msra.mxu0 0.0
      %436 = vmatpush.msra.mxu0 0.0
      %437 = vmatpush.msra.mxu0 0.0
      %438 = vmatpush.msra.mxu0 0.0
      %439 = vmatpush.msra.mxu0 0.0
      %440 = vmatpush.msra.mxu0 0.0
      %441 = vmatpush.msra.mxu0 0.0
      %442 = vmatpush.msra.mxu0 0.0
      %443 = vmatpush.msra.mxu0 0.0
      %444 = vmatpush.msra.mxu0 0.0
      %445 = vmatpush.msra.mxu0 0.0
      %446 = vmatpush.msra.mxu0 %v306
      %447 = vmatpush.msra.mxu0 %v305
      %448 = vmatmul.f32.gmra.mxu0 %v409
      %v449 = vpop.f32.mrf.mxu0
      %v450 = vadd.f32 %v385, %v449
      %451 = vmatmul.f32.gmra.mxu0 %v412
      %v452 = vpop.f32.mrf.mxu0
      %v453 = vadd.f32 %v388, %v452
      %454 = vmatmul.f32.gmra.mxu0 %v415
      %v455 = vpop.f32.mrf.mxu0
      %v456 = vadd.f32 %v391, %v455
      %457 = vmatmul.f32.gmra.mxu0 %v418
      %v458 = vpop.f32.mrf.mxu0
      %v459 = vadd.f32 %v394, %v458
      %460 = vmatmul.f32.gmra.mxu0 %v421
      %v461 = vpop.f32.mrf.mxu0
      %v462 = vadd.f32 %v397, %v461
      %463 = vmatmul.f32.gmra.mxu0 %v424
      %v464 = vpop.f32.mrf.mxu0
      %v465 = vadd.f32 %v400, %v464
      %466 = vmatmul.f32.gmra.mxu0 %v427
      %v467 = vpop.f32.mrf.mxu0
      %v468 = vadd.f32 %v403, %v467
      %469 = vmatmul.f32.gmra.mxu0 %v430
      %v470 = vpop.f32.mrf.mxu0
      %v471 = vadd.f32 %v406, %v470
      %472 = vdwg.mxu0
      %s473 = scalar_lea.vmem %s259, 16
      %v474 = vld [vmem:[%s473] sm:$0xff]
      %v475 = vld [vmem:[%s473 + $0x10] sm:$0xff]
      %v476 = vld [vmem:[%s473 + $0x20] sm:$0xff]
      %v477 = vld [vmem:[%s473 + $0x30] sm:$0xff]
      %v478 = vld [vmem:[%s473 + $0x40] sm:$0xff]
      %v479 = vld [vmem:[%s473 + $0x50] sm:$0xff]
      %v480 = vld [vmem:[%s473 + $0x60] sm:$0xff]
      %v481 = vld [vmem:[%s473 + $0x70] sm:$0xff]
      %vm482 = vcmp.gt.f32.partialorder %v474, 0.0
      %vm483 = vcmp.gt.f32.partialorder %v475, 0.0
      %vm484 = vcmp.gt.f32.partialorder %v476, 0.0
      %vm485 = vcmp.gt.f32.partialorder %v477, 0.0
      %vm486 = vcmp.gt.f32.partialorder %v478, 0.0
      %vm487 = vcmp.gt.f32.partialorder %v479, 0.0
      %vm488 = vcmp.gt.f32.partialorder %v480, 0.0
      %vm489 = vcmp.gt.f32.partialorder %v481, 0.0
      %v490 = vmul.f32 %v474, 0.2
      %v491 = vmul.f32 %v475, 0.2
      %v492 = vmul.f32 %v476, 0.2
      %v493 = vmul.f32 %v477, 0.2
      %v494 = vmul.f32 %v478, 0.2
      %v495 = vmul.f32 %v479, 0.2
      %v496 = vmul.f32 %v480, 0.2
      %v497 = vmul.f32 %v481, 0.2
      %v498 = vsel %vm482, %v474, %v490
      %v499 = vsel %vm483, %v475, %v491
      %v500 = vsel %vm484, %v476, %v492
      %v501 = vsel %vm485, %v477, %v493
      %v502 = vsel %vm486, %v478, %v494
      %v503 = vsel %vm487, %v479, %v495
      %v504 = vsel %vm488, %v480, %v496
      %v505 = vsel %vm489, %v481, %v497
      %s506 = scalar_lea.vmem %s1, 32
      %v507 = vld [vmem:[%s506] sm:$0xff]
      %v508 = vld [vmem:[%s506 + $0x8] sm:$0xff]
      %v510 = vsel %vm342, %v498, 0
      %v513 = vsel %vm342, %v499, 0
      %v516 = vsel %vm342, %v500, 0
      %v519 = vsel %vm342, %v501, 0
      %v522 = vsel %vm342, %v502, 0
      %v525 = vsel %vm342, %v503, 0
      %v528 = vsel %vm342, %v504, 0
      %v531 = vsel %vm342, %v505, 0
      %533 = vmatpush.msra.mxu0 0.0
      %534 = vmatpush.msra.mxu0 0.0
      %535 = vmatpush.msra.mxu0 0.0
      %536 = vmatpush.msra.mxu0 0.0
      %537 = vmatpush.msra.mxu0 0.0
      %538 = vmatpush.msra.mxu0 0.0
      %539 = vmatpush.msra.mxu0 0.0
      %540 = vmatpush.msra.mxu0 0.0
      %541 = vmatpush.msra.mxu0 0.0
      %542 = vmatpush.msra.mxu0 0.0
      %543 = vmatpush.msra.mxu0 0.0
      %544 = vmatpush.msra.mxu0 0.0
      %545 = vmatpush.msra.mxu0 0.0
      %546 = vmatpush.msra.mxu0 0.0
      %547 = vmatpush.msra.mxu0 %v508
      %548 = vmatpush.msra.mxu0 %v507
      %549 = vmatmul.f32.gmra.mxu0 %v510
      %v550 = vpop.f32.mrf.mxu0
      %v551 = vadd.f32 0.0, %v550
      %552 = vmatmul.f32.gmra.mxu0 %v513
      %v553 = vpop.f32.mrf.mxu0
      %v554 = vadd.f32 0.0, %v553
      %555 = vmatmul.f32.gmra.mxu0 %v516
      %v556 = vpop.f32.mrf.mxu0
      %v557 = vadd.f32 0.0, %v556
      %558 = vmatmul.f32.gmra.mxu0 %v519
      %v559 = vpop.f32.mrf.mxu0
      %v560 = vadd.f32 0.0, %v559
      %561 = vmatmul.f32.gmra.mxu0 %v522
      %v562 = vpop.f32.mrf.mxu0
      %v563 = vadd.f32 0.0, %v562
      %564 = vmatmul.f32.gmra.mxu0 %v525
      %v565 = vpop.f32.mrf.mxu0
      %v566 = vadd.f32 0.0, %v565
      %567 = vmatmul.f32.gmra.mxu0 %v528
      %v568 = vpop.f32.mrf.mxu0
      %v569 = vadd.f32 0.0, %v568
      %570 = vmatmul.f32.gmra.mxu0 %v531
      %v571 = vpop.f32.mrf.mxu0
      %v572 = vadd.f32 0.0, %v571
      %573 = vdwg.mxu0
      %v574 = vadd.f32 %v450, %v551
      %v575 = vadd.f32 %v453, %v554
      %v576 = vadd.f32 %v456, %v557
      %v577 = vadd.f32 %v459, %v560
      %v578 = vadd.f32 %v462, %v563
      %v579 = vadd.f32 %v465, %v566
      %v580 = vadd.f32 %v468, %v569
      %v581 = vadd.f32 %v471, %v572
      %v582 = vld [vmem:[%s473 + $0x1] sm:$0xff]
      %v583 = vld [vmem:[%s473 + $0x11] sm:$0xff]
      %v584 = vld [vmem:[%s473 + $0x21] sm:$0xff]
      %v585 = vld [vmem:[%s473 + $0x31] sm:$0xff]
      %v586 = vld [vmem:[%s473 + $0x41] sm:$0xff]
      %v587 = vld [vmem:[%s473 + $0x51] sm:$0xff]
      %v588 = vld [vmem:[%s473 + $0x61] sm:$0xff]
      %v589 = vld [vmem:[%s473 + $0x71] sm:$0xff]
      %vm590 = vcmp.gt.f32.partialorder %v582, 0.0
      %vm591 = vcmp.gt.f32.partialorder %v583, 0.0
      %vm592 = vcmp.gt.f32.partialorder %v584, 0.0
      %vm593 = vcmp.gt.f32.partialorder %v585, 0.0
      %vm594 = vcmp.gt.f32.partialorder %v586, 0.0
      %vm595 = vcmp.gt.f32.partialorder %v587, 0.0
      %vm596 = vcmp.gt.f32.partialorder %v588, 0.0
      %vm597 = vcmp.gt.f32.partialorder %v589, 0.0
      %v598 = vmul.f32 %v582, 0.2
      %v599 = vmul.f32 %v583, 0.2
      %v600 = vmul.f32 %v584, 0.2
      %v601 = vmul.f32 %v585, 0.2
      %v602 = vmul.f32 %v586, 0.2
      %v603 = vmul.f32 %v587, 0.2
      %v604 = vmul.f32 %v588, 0.2
      %v605 = vmul.f32 %v589, 0.2
      %v606 = vsel %vm590, %v582, %v598
      %v607 = vsel %vm591, %v583, %v599
      %v608 = vsel %vm592, %v584, %v600
      %v609 = vsel %vm593, %v585, %v601
      %v610 = vsel %vm594, %v586, %v602
      %v611 = vsel %vm595, %v587, %v603
      %v612 = vsel %vm596, %v588, %v604
      %v613 = vsel %vm597, %v589, %v605
      %s614 = scalar_lea.vmem %s1, 48
      %v615 = vld [vmem:[%s614] sm:$0xff]
      %v616 = vld [vmem:[%s614 + $0x8] sm:$0xff]
      %v618 = vsel %vm342, %v606, 0
      %v621 = vsel %vm342, %v607, 0
      %v624 = vsel %vm342, %v608, 0
      %v627 = vsel %vm342, %v609, 0
      %v630 = vsel %vm342, %v610, 0
      %v633 = vsel %vm342, %v611, 0
      %v636 = vsel %vm342, %v612, 0
      %v639 = vsel %vm342, %v613, 0
      %641 = vmatpush.msra.mxu0 0.0
      %642 = vmatpush.msra.mxu0 0.0
      %643 = vmatpush.msra.mxu0 0.0
      %644 = vmatpush.msra.mxu0 0.0
      %645 = vmatpush.msra.mxu0 0.0
      %646 = vmatpush.msra.mxu0 0.0
      %647 = vmatpush.msra.mxu0 0.0
      %648 = vmatpush.msra.mxu0 0.0
      %649 = vmatpush.msra.mxu0 0.0
      %650 = vmatpush.msra.mxu0 0.0
      %651 = vmatpush.msra.mxu0 0.0
      %652 = vmatpush.msra.mxu0 0.0
      %653 = vmatpush.msra.mxu0 0.0
      %654 = vmatpush.msra.mxu0 0.0
      %655 = vmatpush.msra.mxu0 %v616
      %656 = vmatpush.msra.mxu0 %v615
      %657 = vmatmul.f32.gmra.mxu0 %v618
      %v658 = vpop.f32.mrf.mxu0
      %v659 = vadd.f32 0.0, %v658
      %660 = vmatmul.f32.gmra.mxu0 %v621
      %v661 = vpop.f32.mrf.mxu0
      %v662 = vadd.f32 0.0, %v661
      %663 = vmatmul.f32.gmra.mxu0 %v624
      %v664 = vpop.f32.mrf.mxu0
      %v665 = vadd.f32 0.0, %v664
      %666 = vmatmul.f32.gmra.mxu0 %v627
      %v667 = vpop.f32.mrf.mxu0
      %v668 = vadd.f32 0.0, %v667
      %669 = vmatmul.f32.gmra.mxu0 %v630
      %v670 = vpop.f32.mrf.mxu0
      %v671 = vadd.f32 0.0, %v670
      %672 = vmatmul.f32.gmra.mxu0 %v633
      %v673 = vpop.f32.mrf.mxu0
      %v674 = vadd.f32 0.0, %v673
      %675 = vmatmul.f32.gmra.mxu0 %v636
      %v676 = vpop.f32.mrf.mxu0
      %v677 = vadd.f32 0.0, %v676
      %678 = vmatmul.f32.gmra.mxu0 %v639
      %v679 = vpop.f32.mrf.mxu0
      %v680 = vadd.f32 0.0, %v679
      %681 = vdwg.mxu0
      %v682 = vadd.f32 %v574, %v659
      %v683 = vadd.f32 %v575, %v662
      %v684 = vadd.f32 %v576, %v665
      %v685 = vadd.f32 %v577, %v668
      %v686 = vadd.f32 %v578, %v671
      %v687 = vadd.f32 %v579, %v674
      %v688 = vadd.f32 %v580, %v677
      %v689 = vadd.f32 %v581, %v680
      %v690 = vmax.f32 %v682, 0.0
      %v691 = vmax.f32 %v683, 0.0
      %v692 = vmax.f32 %v684, 0.0
      %v693 = vmax.f32 %v685, 0.0
      %v694 = vmax.f32 %v686, 0.0
      %v695 = vmax.f32 %v687, 0.0
      %v696 = vmax.f32 %v688, 0.0
      %v697 = vmax.f32 %v689, 0.0
      %vm698 = vcmask 64512
      %699 = vst.msk [vmem:[#allocation2] sm:$0xff] %vm698, 0.0
      %vm700 = vcmask 58368
      %701 = vst.msk [vmem:[#allocation2 + $0x8] sm:$0x3] %vm700, 0.0
      %702 = vst.msk [vmem:[#allocation2 + $0x10] sm:$0xff] %vm698, 0.0
      %703 = vst.msk [vmem:[#allocation2 + $0x18] sm:$0x3] %vm700, 0.0
      %704 = vst.msk [vmem:[#allocation2 + $0x20] sm:$0xff] %vm698, 0.0
      %705 = vst.msk [vmem:[#allocation2 + $0x28] sm:$0x3] %vm700, 0.0
      %706 = vst.msk [vmem:[#allocation2 + $0x30] sm:$0xff] %vm698, 0.0
      %707 = vst.msk [vmem:[#allocation2 + $0x38] sm:$0x3] %vm700, 0.0
      %708 = vst.msk [vmem:[#allocation2 + $0x40] sm:$0xff] %vm698, 0.0
      %709 = vst.msk [vmem:[#allocation2 + $0x48] sm:$0x3] %vm700, 0.0
      %710 = vst.msk [vmem:[#allocation2 + $0x50] sm:$0xff] %vm698, 0.0
      %711 = vst.msk [vmem:[#allocation2 + $0x58] sm:$0x3] %vm700, 0.0
      %712 = vst.msk [vmem:[#allocation2 + $0x60] sm:$0xff] %vm698, 0.0
      %713 = vst.msk [vmem:[#allocation2 + $0x68] sm:$0x3] %vm700, 0.0
      %714 = vst.msk [vmem:[#allocation2 + $0x70] sm:$0xff] %vm698, 0.0
      %715 = vst.msk [vmem:[#allocation2 + $0x78] sm:$0x3] %vm700, 0.0
      %716 = vst.msk [vmem:[#allocation2 + $0x80] sm:$0xff] %vm698, 0.0
      %717 = vst.msk [vmem:[#allocation2 + $0x88] sm:$0x3] %vm700, 0.0
      %718 = vst.msk [vmem:[#allocation2 + $0x90] sm:$0xff] %vm698, 0.0
      %719 = vst.msk [vmem:[#allocation2 + $0x98] sm:$0x3] %vm700, 0.0
      %s720 = scalar_lea.vmem [#allocation2], 16
      %721 = vst.msk [vmem:[%s720 + $0x1] sm:$0xff] %vm698, %v690
      %722 = vst.msk [vmem:[%s720 + $0x11] sm:$0xff] %vm698, %v691
      %723 = vst.msk [vmem:[%s720 + $0x21] sm:$0xff] %vm698, %v692
      %724 = vst.msk [vmem:[%s720 + $0x31] sm:$0xff] %vm698, %v693
      %725 = vst.msk [vmem:[%s720 + $0x41] sm:$0xff] %vm698, %v694
      %726 = vst.msk [vmem:[%s720 + $0x51] sm:$0xff] %vm698, %v695
      %727 = vst.msk [vmem:[%s720 + $0x61] sm:$0xff] %vm698, %v696
      %728 = vst.msk [vmem:[%s720 + $0x71] sm:$0xff] %vm698, %v697
      %v729 = vld [vmem:[#allocation2] sm:$0xff]
      %v730 = vld [vmem:[#allocation2 + $0x10] sm:$0xff]
      %v731 = vld [vmem:[#allocation2 + $0x20] sm:$0xff]
      %v732 = vld [vmem:[#allocation2 + $0x30] sm:$0xff]
      %v733 = vld [vmem:[#allocation2 + $0x40] sm:$0xff]
      %v734 = vld [vmem:[#allocation2 + $0x50] sm:$0xff]
      %v735 = vld [vmem:[#allocation2 + $0x60] sm:$0xff]
      %v736 = vld [vmem:[#allocation2 + $0x70] sm:$0xff]
      %v737 = vld [vmem:[#allocation2 + $0x1] sm:$0xff]
      %v738 = vld [vmem:[#allocation2 + $0x11] sm:$0xff]
      %v739 = vld [vmem:[#allocation2 + $0x21] sm:$0xff]
      %v740 = vld [vmem:[#allocation2 + $0x31] sm:$0xff]
      %v741 = vld [vmem:[#allocation2 + $0x41] sm:$0xff]
      %v742 = vld [vmem:[#allocation2 + $0x51] sm:$0xff]
      %v743 = vld [vmem:[#allocation2 + $0x61] sm:$0xff]
      %v744 = vld [vmem:[#allocation2 + $0x71] sm:$0xff]
      %v745 = vld [vmem:[#allocation2 + $0x2] sm:$0xff]
      %v746 = vld [vmem:[#allocation2 + $0x12] sm:$0xff]
      %v747 = vld [vmem:[#allocation2 + $0x22] sm:$0xff]
      %v748 = vld [vmem:[#allocation2 + $0x32] sm:$0xff]
      %v749 = vld [vmem:[#allocation2 + $0x42] sm:$0xff]
      %v750 = vld [vmem:[#allocation2 + $0x52] sm:$0xff]
      %v751 = vld [vmem:[#allocation2 + $0x62] sm:$0xff]
      %v752 = vld [vmem:[#allocation2 + $0x72] sm:$0xff]
      %v753 = vld [vmem:[%s720] sm:$0xff]
      %v754 = vld [vmem:[%s720 + $0x10] sm:$0xff]
      %v755 = vld [vmem:[%s720 + $0x20] sm:$0xff]
      %v756 = vld [vmem:[%s720 + $0x30] sm:$0xff]
      %v757 = vld [vmem:[%s720 + $0x40] sm:$0xff]
      %v758 = vld [vmem:[%s720 + $0x50] sm:$0xff]
      %v759 = vld [vmem:[%s720 + $0x60] sm:$0xff]
      %v760 = vld [vmem:[%s720 + $0x70] sm:$0xff]
      %v761 = vld [vmem:[%s720 + $0x1] sm:$0xff]
      %v762 = vld [vmem:[%s720 + $0x11] sm:$0xff]
      %v763 = vld [vmem:[%s720 + $0x21] sm:$0xff]
      %v764 = vld [vmem:[%s720 + $0x31] sm:$0xff]
      %v765 = vld [vmem:[%s720 + $0x41] sm:$0xff]
      %v766 = vld [vmem:[%s720 + $0x51] sm:$0xff]
      %v767 = vld [vmem:[%s720 + $0x61] sm:$0xff]
      %v768 = vld [vmem:[%s720 + $0x71] sm:$0xff]
      %v769 = vld [vmem:[%s720 + $0x2] sm:$0xff]
      %v770 = vld [vmem:[%s720 + $0x12] sm:$0xff]
      %v771 = vld [vmem:[%s720 + $0x22] sm:$0xff]
      %v772 = vld [vmem:[%s720 + $0x32] sm:$0xff]
      %v773 = vld [vmem:[%s720 + $0x42] sm:$0xff]
      %v774 = vld [vmem:[%s720 + $0x52] sm:$0xff]
      %v775 = vld [vmem:[%s720 + $0x62] sm:$0xff]
      %v776 = vld [vmem:[%s720 + $0x72] sm:$0xff]
      %s777 = scalar_lea.vmem [#allocation2], 32
      %v778 = vld [vmem:[%s777] sm:$0xff]
      %v779 = vld [vmem:[%s777 + $0x10] sm:$0xff]
      %v780 = vld [vmem:[%s777 + $0x20] sm:$0xff]
      %v781 = vld [vmem:[%s777 + $0x30] sm:$0xff]
      %v782 = vld [vmem:[%s777 + $0x40] sm:$0xff]
      %v783 = vld [vmem:[%s777 + $0x50] sm:$0xff]
      %v784 = vld [vmem:[%s777 + $0x60] sm:$0xff]
      %v785 = vld [vmem:[%s777 + $0x70] sm:$0xff]
      %v786 = vld [vmem:[%s777 + $0x1] sm:$0xff]
      %v787 = vld [vmem:[%s777 + $0x11] sm:$0xff]
      %v788 = vld [vmem:[%s777 + $0x21] sm:$0xff]
      %v789 = vld [vmem:[%s777 + $0x31] sm:$0xff]
      %v790 = vld [vmem:[%s777 + $0x41] sm:$0xff]
      %v791 = vld [vmem:[%s777 + $0x51] sm:$0xff]
      %v792 = vld [vmem:[%s777 + $0x61] sm:$0xff]
      %v793 = vld [vmem:[%s777 + $0x71] sm:$0xff]
      %v794 = vld [vmem:[%s777 + $0x2] sm:$0xff]
      %v795 = vld [vmem:[%s777 + $0x12] sm:$0xff]
      %v796 = vld [vmem:[%s777 + $0x22] sm:$0xff]
      %v797 = vld [vmem:[%s777 + $0x32] sm:$0xff]
      %v798 = vld [vmem:[%s777 + $0x42] sm:$0xff]
      %v799 = vld [vmem:[%s777 + $0x52] sm:$0xff]
      %v800 = vld [vmem:[%s777 + $0x62] sm:$0xff]
      %v801 = vld [vmem:[%s777 + $0x72] sm:$0xff]
      %v802 = vld [vmem:[%s2] sm:$0xf]
      %s803 = scalar_lea.vmem %s2, 4
      %v804 = vld [vmem:[%s803] sm:$0xf]
      %v806 = vsel %vm698, %v804, 0
      %v809 = vsel %vm698, %v737, 0
      %v812 = vsel %vm698, %v738, 0
      %v815 = vsel %vm698, %v739, 0
      %v818 = vsel %vm698, %v740, 0
      %v821 = vsel %vm698, %v741, 0
      %v824 = vsel %vm698, %v742, 0
      %v827 = vsel %vm698, %v743, 0
      %v830 = vsel %vm698, %v744, 0
      %832 = vmatpush.xpose.msra.mxu0 0.0
      %833 = vmatpush.xpose.msra.mxu0 0.0
      %834 = vmatpush.xpose.msra.mxu0 0.0
      %835 = vmatpush.xpose.msra.mxu0 0.0
      %836 = vmatpush.xpose.msra.mxu0 0.0
      %837 = vmatpush.xpose.msra.mxu0 0.0
      %838 = vmatpush.xpose.msra.mxu0 0.0
      %839 = vmatpush.xpose.msra.mxu0 0.0
      %840 = vmatpush.xpose.msra.mxu0 %v830
      %841 = vmatpush.xpose.msra.mxu0 %v827
      %842 = vmatpush.xpose.msra.mxu0 %v824
      %843 = vmatpush.xpose.msra.mxu0 %v821
      %844 = vmatpush.xpose.msra.mxu0 %v818
      %845 = vmatpush.xpose.msra.mxu0 %v815
      %846 = vmatpush.xpose.msra.mxu0 %v812
      %847 = vmatpush.xpose.msra.mxu0 %v809
      %848 = vmatmul.f32.gmra.mxu0 %v806
      %v849 = vpop.f32.mrf.mxu0
      %v850 = vadd.f32 0.0, %v849
      %851 = vdwg.mxu0
      %v853 = vsel %vm698, %v802, 0
      %v856 = vsel %vm698, %v729, 0
      %v859 = vsel %vm698, %v730, 0
      %v862 = vsel %vm698, %v731, 0
      %v865 = vsel %vm698, %v732, 0
      %v868 = vsel %vm698, %v733, 0
      %v871 = vsel %vm698, %v734, 0
      %v874 = vsel %vm698, %v735, 0
      %v877 = vsel %vm698, %v736, 0
      %879 = vmatpush.xpose.msra.mxu0 0.0
      %880 = vmatpush.xpose.msra.mxu0 0.0
      %881 = vmatpush.xpose.msra.mxu0 0.0
      %882 = vmatpush.xpose.msra.mxu0 0.0
      %883 = vmatpush.xpose.msra.mxu0 0.0
      %884 = vmatpush.xpose.msra.mxu0 0.0
      %885 = vmatpush.xpose.msra.mxu0 0.0
      %886 = vmatpush.xpose.msra.mxu0 0.0
      %887 = vmatpush.xpose.msra.mxu0 %v877
      %888 = vmatpush.xpose.msra.mxu0 %v874
      %889 = vmatpush.xpose.msra.mxu0 %v871
      %890 = vmatpush.xpose.msra.mxu0 %v868
      %891 = vmatpush.xpose.msra.mxu0 %v865
      %892 = vmatpush.xpose.msra.mxu0 %v862
      %893 = vmatpush.xpose.msra.mxu0 %v859
      %894 = vmatpush.xpose.msra.mxu0 %v856
      %895 = vmatmul.f32.gmra.mxu0 %v853
      %v896 = vpop.f32.mrf.mxu0
      %v897 = vadd.f32 %v850, %v896
      %898 = vdwg.mxu0
      %s899 = scalar_lea.vmem %s2, 8
      %v900 = vld [vmem:[%s899] sm:$0xf]
      %v902 = vsel %vm698, %v900, 0
      %v905 = vsel %vm698, %v753, 0
      %v908 = vsel %vm698, %v754, 0
      %v911 = vsel %vm698, %v755, 0
      %v914 = vsel %vm698, %v756, 0
      %v917 = vsel %vm698, %v757, 0
      %v920 = vsel %vm698, %v758, 0
      %v923 = vsel %vm698, %v759, 0
      %v926 = vsel %vm698, %v760, 0
      %928 = vmatpush.xpose.msra.mxu0 0.0
      %929 = vmatpush.xpose.msra.mxu0 0.0
      %930 = vmatpush.xpose.msra.mxu0 0.0
      %931 = vmatpush.xpose.msra.mxu0 0.0
      %932 = vmatpush.xpose.msra.mxu0 0.0
      %933 = vmatpush.xpose.msra.mxu0 0.0
      %934 = vmatpush.xpose.msra.mxu0 0.0
      %935 = vmatpush.xpose.msra.mxu0 0.0
      %936 = vmatpush.xpose.msra.mxu0 %v926
      %937 = vmatpush.xpose.msra.mxu0 %v923
      %938 = vmatpush.xpose.msra.mxu0 %v920
      %939 = vmatpush.xpose.msra.mxu0 %v917
      %940 = vmatpush.xpose.msra.mxu0 %v914
      %941 = vmatpush.xpose.msra.mxu0 %v911
      %942 = vmatpush.xpose.msra.mxu0 %v908
      %943 = vmatpush.xpose.msra.mxu0 %v905
      %944 = vmatmul.f32.gmra.mxu0 %v902
      %v945 = vpop.f32.mrf.mxu0
      %v946 = vadd.f32 0.0, %v945
      %947 = vdwg.mxu0
      %v948 = vadd.f32 %v897, %v946
      %s949 = scalar_lea.vmem %s2, 12
      %v950 = vld [vmem:[%s949] sm:$0xf]
      %v952 = vsel %vm698, %v950, 0
      %v955 = vsel %vm698, %v761, 0
      %v958 = vsel %vm698, %v762, 0
      %v961 = vsel %vm698, %v763, 0
      %v964 = vsel %vm698, %v764, 0
      %v967 = vsel %vm698, %v765, 0
      %v970 = vsel %vm698, %v766, 0
      %v973 = vsel %vm698, %v767, 0
      %v976 = vsel %vm698, %v768, 0
      %978 = vmatpush.xpose.msra.mxu0 0.0
      %979 = vmatpush.xpose.msra.mxu0 0.0
      %980 = vmatpush.xpose.msra.mxu0 0.0
      %981 = vmatpush.xpose.msra.mxu0 0.0
      %982 = vmatpush.xpose.msra.mxu0 0.0
      %983 = vmatpush.xpose.msra.mxu0 0.0
      %984 = vmatpush.xpose.msra.mxu0 0.0
      %985 = vmatpush.xpose.msra.mxu0 0.0
      %986 = vmatpush.xpose.msra.mxu0 %v976
      %987 = vmatpush.xpose.msra.mxu0 %v973
      %988 = vmatpush.xpose.msra.mxu0 %v970
      %989 = vmatpush.xpose.msra.mxu0 %v967
      %990 = vmatpush.xpose.msra.mxu0 %v964
      %991 = vmatpush.xpose.msra.mxu0 %v961
      %992 = vmatpush.xpose.msra.mxu0 %v958
      %993 = vmatpush.xpose.msra.mxu0 %v955
      %994 = vmatmul.f32.gmra.mxu0 %v952
      %v995 = vpop.f32.mrf.mxu0
      %v996 = vadd.f32 0.0, %v995
      %997 = vdwg.mxu0
      %v998 = vadd.f32 %v948, %v996
      %v999 = vld [vmem:[%s3] sm:$0xff]
      %v1000 = vld [vmem:[%s3 + $0x8] sm:$0xff]
      %v1001 = vld [vmem:[%s3 + $0x10] sm:$0xff]
      %v1002 = vld [vmem:[%s3 + $0x18] sm:$0xff]
      %v1003 = vld [vmem:[%s3 + $0x20] sm:$0xff]
      %v1004 = vld [vmem:[%s3 + $0x28] sm:$0xff]
      %v1005 = vld [vmem:[%s3 + $0x30] sm:$0xff]
      %v1006 = vld [vmem:[%s3 + $0x38] sm:$0xff]
      %v1007 = vld [vmem:[%s3 + $0x40] sm:$0xff]
      %v1008 = vld [vmem:[%s3 + $0x48] sm:$0xff]
      %v1009 = vld [vmem:[%s3 + $0x50] sm:$0xff]
      %v1010 = vld [vmem:[%s3 + $0x58] sm:$0xff]
      %v1011 = vld [vmem:[%s3 + $0x60] sm:$0xff]
      %v1012 = vld [vmem:[%s3 + $0x68] sm:$0xff]
      %v1013 = vld [vmem:[%s3 + $0x70] sm:$0xff]
      %v1014 = vld [vmem:[%s3 + $0x78] sm:$0xff]
      %s1015 = scalar_lea.vmem %s2, 16
      %v1016 = vld [vmem:[%s1015] sm:$0xf]
      %s1017 = scalar_lea.vmem %s2, 20
      %v1018 = vld [vmem:[%s1017] sm:$0xf]
      %v1020 = vsel %vm698, %v1018, 0
      %v1023 = vsel %vm698, %v745, 0
      %v1026 = vsel %vm698, %v746, 0
      %v1029 = vsel %vm698, %v747, 0
      %v1032 = vsel %vm698, %v748, 0
      %v1035 = vsel %vm698, %v749, 0
      %v1038 = vsel %vm698, %v750, 0
      %v1041 = vsel %vm698, %v751, 0
      %v1044 = vsel %vm698, %v752, 0
      %1046 = vmatpush.xpose.msra.mxu0 0.0
      %1047 = vmatpush.xpose.msra.mxu0 0.0
      %1048 = vmatpush.xpose.msra.mxu0 0.0
      %1049 = vmatpush.xpose.msra.mxu0 0.0
      %1050 = vmatpush.xpose.msra.mxu0 0.0
      %1051 = vmatpush.xpose.msra.mxu0 0.0
      %1052 = vmatpush.xpose.msra.mxu0 0.0
      %1053 = vmatpush.xpose.msra.mxu0 0.0
      %1054 = vmatpush.xpose.msra.mxu0 %v1044
      %1055 = vmatpush.xpose.msra.mxu0 %v1041
      %1056 = vmatpush.xpose.msra.mxu0 %v1038
      %1057 = vmatpush.xpose.msra.mxu0 %v1035
      %1058 = vmatpush.xpose.msra.mxu0 %v1032
      %1059 = vmatpush.xpose.msra.mxu0 %v1029
      %1060 = vmatpush.xpose.msra.mxu0 %v1026
      %1061 = vmatpush.xpose.msra.mxu0 %v1023
      %1062 = vmatmul.f32.gmra.mxu0 %v1020
      %v1063 = vpop.f32.mrf.mxu0
      %v1064 = vadd.f32 0.0, %v1063
      %1065 = vdwg.mxu0
      %v1067 = vsel %vm698, %v1016, 0
      %1069 = vmatpush.xpose.msra.mxu0 0.0
      %1070 = vmatpush.xpose.msra.mxu0 0.0
      %1071 = vmatpush.xpose.msra.mxu0 0.0
      %1072 = vmatpush.xpose.msra.mxu0 0.0
      %1073 = vmatpush.xpose.msra.mxu0 0.0
      %1074 = vmatpush.xpose.msra.mxu0 0.0
      %1075 = vmatpush.xpose.msra.mxu0 0.0
      %1076 = vmatpush.xpose.msra.mxu0 0.0
      %1077 = vmatpush.xpose.msra.mxu0 %v830
      %1078 = vmatpush.xpose.msra.mxu0 %v827
      %1079 = vmatpush.xpose.msra.mxu0 %v824
      %1080 = vmatpush.xpose.msra.mxu0 %v821
      %1081 = vmatpush.xpose.msra.mxu0 %v818
      %1082 = vmatpush.xpose.msra.mxu0 %v815
      %1083 = vmatpush.xpose.msra.mxu0 %v812
      %1084 = vmatpush.xpose.msra.mxu0 %v809
      %1085 = vmatmul.f32.gmra.mxu0 %v1067
      %v1086 = vpop.f32.mrf.mxu0
      %v1087 = vadd.f32 %v1064, %v1086
      %1088 = vdwg.mxu0
      %s1089 = scalar_lea.vmem %s2, 24
      %v1090 = vld [vmem:[%s1089] sm:$0xf]
      %v1092 = vsel %vm698, %v1090, 0
      %1094 = vmatpush.xpose.msra.mxu0 0.0
      %1095 = vmatpush.xpose.msra.mxu0 0.0
      %1096 = vmatpush.xpose.msra.mxu0 0.0
      %1097 = vmatpush.xpose.msra.mxu0 0.0
      %1098 = vmatpush.xpose.msra.mxu0 0.0
      %1099 = vmatpush.xpose.msra.mxu0 0.0
      %1100 = vmatpush.xpose.msra.mxu0 0.0
      %1101 = vmatpush.xpose.msra.mxu0 0.0
      %1102 = vmatpush.xpose.msra.mxu0 %v976
      %1103 = vmatpush.xpose.msra.mxu0 %v973
      %1104 = vmatpush.xpose.msra.mxu0 %v970
      %1105 = vmatpush.xpose.msra.mxu0 %v967
      %1106 = vmatpush.xpose.msra.mxu0 %v964
      %1107 = vmatpush.xpose.msra.mxu0 %v961
      %1108 = vmatpush.xpose.msra.mxu0 %v958
      %1109 = vmatpush.xpose.msra.mxu0 %v955
      %1110 = vmatmul.f32.gmra.mxu0 %v1092
      %v1111 = vpop.f32.mrf.mxu0
      %v1112 = vadd.f32 0.0, %v1111
      %1113 = vdwg.mxu0
      %v1114 = vadd.f32 %v1087, %v1112
      %s1115 = scalar_lea.vmem %s2, 28
      %v1116 = vld [vmem:[%s1115] sm:$0xf]
      %v1118 = vsel %vm698, %v1116, 0
      %v1121 = vsel %vm698, %v769, 0
      %v1124 = vsel %vm698, %v770, 0
      %v1127 = vsel %vm698, %v771, 0
      %v1130 = vsel %vm698, %v772, 0
      %v1133 = vsel %vm698, %v773, 0
      %v1136 = vsel %vm698, %v774, 0
      %v1139 = vsel %vm698, %v775, 0
      %v1142 = vsel %vm698, %v776, 0
      %1144 = vmatpush.xpose.msra.mxu0 0.0
      %1145 = vmatpush.xpose.msra.mxu0 0.0
      %1146 = vmatpush.xpose.msra.mxu0 0.0
      %1147 = vmatpush.xpose.msra.mxu0 0.0
      %1148 = vmatpush.xpose.msra.mxu0 0.0
      %1149 = vmatpush.xpose.msra.mxu0 0.0
      %1150 = vmatpush.xpose.msra.mxu0 0.0
      %1151 = vmatpush.xpose.msra.mxu0 0.0
      %1152 = vmatpush.xpose.msra.mxu0 %v1142
      %1153 = vmatpush.xpose.msra.mxu0 %v1139
      %1154 = vmatpush.xpose.msra.mxu0 %v1136
      %1155 = vmatpush.xpose.msra.mxu0 %v1133
      %1156 = vmatpush.xpose.msra.mxu0 %v1130
      %1157 = vmatpush.xpose.msra.mxu0 %v1127
      %1158 = vmatpush.xpose.msra.mxu0 %v1124
      %1159 = vmatpush.xpose.msra.mxu0 %v1121
      %1160 = vmatmul.f32.gmra.mxu0 %v1118
      %v1161 = vpop.f32.mrf.mxu0
      %v1162 = vadd.f32 0.0, %v1161
      %1163 = vdwg.mxu0
      %v1164 = vadd.f32 %v1114, %v1162
      %s1165 = scalar_lea.vmem %s3, 128
      %v1166 = vld [vmem:[%s1165] sm:$0xff]
      %v1167 = vld [vmem:[%s1165 + $0x8] sm:$0xff]
      %v1168 = vld [vmem:[%s1165 + $0x10] sm:$0xff]
      %v1169 = vld [vmem:[%s1165 + $0x18] sm:$0xff]
      %v1170 = vld [vmem:[%s1165 + $0x20] sm:$0xff]
      %v1171 = vld [vmem:[%s1165 + $0x28] sm:$0xff]
      %v1172 = vld [vmem:[%s1165 + $0x30] sm:$0xff]
      %v1173 = vld [vmem:[%s1165 + $0x38] sm:$0xff]
      %v1174 = vld [vmem:[%s1165 + $0x40] sm:$0xff]
      %v1175 = vld [vmem:[%s1165 + $0x48] sm:$0xff]
      %v1176 = vld [vmem:[%s1165 + $0x50] sm:$0xff]
      %v1177 = vld [vmem:[%s1165 + $0x58] sm:$0xff]
      %v1178 = vld [vmem:[%s1165 + $0x60] sm:$0xff]
      %v1179 = vld [vmem:[%s1165 + $0x68] sm:$0xff]
      %v1180 = vld [vmem:[%s1165 + $0x70] sm:$0xff]
      %v1181 = vld [vmem:[%s1165 + $0x78] sm:$0xff]
      %vm1182 = vcmask 523264
      %v1184 = vsel %vm1182, %v1164, 0
      %1186 = vmatpush.msra.mxu0 0.0
      %1187 = vmatpush.msra.mxu0 0.0
      %1188 = vmatpush.msra.mxu0 0.0
      %1189 = vmatpush.msra.mxu0 0.0
      %1190 = vmatpush.msra.mxu0 0.0
      %1191 = vmatpush.msra.mxu0 0.0
      %1192 = vmatpush.msra.mxu0 0.0
      %1193 = vmatpush.msra.mxu0 0.0
      %1194 = vmatpush.msra.mxu0 %v1180
      %1195 = vmatpush.msra.mxu0 %v1178
      %1196 = vmatpush.msra.mxu0 %v1176
      %1197 = vmatpush.msra.mxu0 %v1174
      %1198 = vmatpush.msra.mxu0 %v1172
      %1199 = vmatpush.msra.mxu0 %v1170
      %1200 = vmatpush.msra.mxu0 %v1168
      %1201 = vmatpush.msra.mxu0 %v1166
      %1202 = vmatmul.f32.gmra.mxu0 %v1184
      %v1203 = vpop.f32.mrf.mxu0
      %v1204 = vadd.f32 0.0, %v1203
      %1205 = vdwg.mxu0
      %1206 = vmatpush.msra.mxu0 0.0
      %1207 = vmatpush.msra.mxu0 0.0
      %1208 = vmatpush.msra.mxu0 0.0
      %1209 = vmatpush.msra.mxu0 0.0
      %1210 = vmatpush.msra.mxu0 0.0
      %1211 = vmatpush.msra.mxu0 0.0
      %1212 = vmatpush.msra.mxu0 0.0
      %1213 = vmatpush.msra.mxu0 0.0
      %1214 = vmatpush.msra.mxu0 %v1181
      %1215 = vmatpush.msra.mxu0 %v1179
      %1216 = vmatpush.msra.mxu0 %v1177
      %1217 = vmatpush.msra.mxu0 %v1175
      %1218 = vmatpush.msra.mxu0 %v1173
      %1219 = vmatpush.msra.mxu0 %v1171
      %1220 = vmatpush.msra.mxu0 %v1169
      %1221 = vmatpush.msra.mxu0 %v1167
      %1222 = vmatmul.f32.gmra.mxu0 %v1184
      %v1223 = vpop.f32.mrf.mxu0
      %v1224 = vadd.f32 0.0, %v1223
      %1225 = vdwg.mxu0
      %v1227 = vsel %vm1182, %v998, 0
      %1229 = vmatpush.msra.mxu0 0.0
      %1230 = vmatpush.msra.mxu0 0.0
      %1231 = vmatpush.msra.mxu0 0.0
      %1232 = vmatpush.msra.mxu0 0.0
      %1233 = vmatpush.msra.mxu0 0.0
      %1234 = vmatpush.msra.mxu0 0.0
      %1235 = vmatpush.msra.mxu0 0.0
      %1236 = vmatpush.msra.mxu0 0.0
      %1237 = vmatpush.msra.mxu0 %v1013
      %1238 = vmatpush.msra.mxu0 %v1011
      %1239 = vmatpush.msra.mxu0 %v1009
      %1240 = vmatpush.msra.mxu0 %v1007
      %1241 = vmatpush.msra.mxu0 %v1005
      %1242 = vmatpush.msra.mxu0 %v1003
      %1243 = vmatpush.msra.mxu0 %v1001
      %1244 = vmatpush.msra.mxu0 %v999
      %1245 = vmatmul.f32.gmra.mxu0 %v1227
      %v1246 = vpop.f32.mrf.mxu0
      %v1247 = vadd.f32 %v1204, %v1246
      %1248 = vdwg.mxu0
      %1249 = vmatpush.msra.mxu0 0.0
      %1250 = vmatpush.msra.mxu0 0.0
      %1251 = vmatpush.msra.mxu0 0.0
      %1252 = vmatpush.msra.mxu0 0.0
      %1253 = vmatpush.msra.mxu0 0.0
      %1254 = vmatpush.msra.mxu0 0.0
      %1255 = vmatpush.msra.mxu0 0.0
      %1256 = vmatpush.msra.mxu0 0.0
      %1257 = vmatpush.msra.mxu0 %v1014
      %1258 = vmatpush.msra.mxu0 %v1012
      %1259 = vmatpush.msra.mxu0 %v1010
      %1260 = vmatpush.msra.mxu0 %v1008
      %1261 = vmatpush.msra.mxu0 %v1006
      %1262 = vmatpush.msra.mxu0 %v1004
      %1263 = vmatpush.msra.mxu0 %v1002
      %1264 = vmatpush.msra.mxu0 %v1000
      %1265 = vmatmul.f32.gmra.mxu0 %v1227
      %v1266 = vpop.f32.mrf.mxu0
      %v1267 = vadd.f32 %v1224, %v1266
      %1268 = vdwg.mxu0
      %s1269 = scalar_lea.vmem %s2, 32
      %v1270 = vld [vmem:[%s1269] sm:$0xf]
      %s1271 = scalar_lea.vmem %s2, 36
      %v1272 = vld [vmem:[%s1271] sm:$0xf]
      %v1274 = vsel %vm698, %v1272, 0
      %1276 = vmatpush.xpose.msra.mxu0 0.0
      %1277 = vmatpush.xpose.msra.mxu0 0.0
      %1278 = vmatpush.xpose.msra.mxu0 0.0
      %1279 = vmatpush.xpose.msra.mxu0 0.0
      %1280 = vmatpush.xpose.msra.mxu0 0.0
      %1281 = vmatpush.xpose.msra.mxu0 0.0
      %1282 = vmatpush.xpose.msra.mxu0 0.0
      %1283 = vmatpush.xpose.msra.mxu0 0.0
      %1284 = vmatpush.xpose.msra.mxu0 %v976
      %1285 = vmatpush.xpose.msra.mxu0 %v973
      %1286 = vmatpush.xpose.msra.mxu0 %v970
      %1287 = vmatpush.xpose.msra.mxu0 %v967
      %1288 = vmatpush.xpose.msra.mxu0 %v964
      %1289 = vmatpush.xpose.msra.mxu0 %v961
      %1290 = vmatpush.xpose.msra.mxu0 %v958
      %1291 = vmatpush.xpose.msra.mxu0 %v955
      %1292 = vmatmul.f32.gmra.mxu0 %v1274
      %v1293 = vpop.f32.mrf.mxu0
      %v1294 = vadd.f32 0.0, %v1293
      %1295 = vdwg.mxu0
      %v1297 = vsel %vm698, %v1270, 0
      %1299 = vmatpush.xpose.msra.mxu0 0.0
      %1300 = vmatpush.xpose.msra.mxu0 0.0
      %1301 = vmatpush.xpose.msra.mxu0 0.0
      %1302 = vmatpush.xpose.msra.mxu0 0.0
      %1303 = vmatpush.xpose.msra.mxu0 0.0
      %1304 = vmatpush.xpose.msra.mxu0 0.0
      %1305 = vmatpush.xpose.msra.mxu0 0.0
      %1306 = vmatpush.xpose.msra.mxu0 0.0
      %1307 = vmatpush.xpose.msra.mxu0 %v926
      %1308 = vmatpush.xpose.msra.mxu0 %v923
      %1309 = vmatpush.xpose.msra.mxu0 %v920
      %1310 = vmatpush.xpose.msra.mxu0 %v917
      %1311 = vmatpush.xpose.msra.mxu0 %v914
      %1312 = vmatpush.xpose.msra.mxu0 %v911
      %1313 = vmatpush.xpose.msra.mxu0 %v908
      %1314 = vmatpush.xpose.msra.mxu0 %v905
      %1315 = vmatmul.f32.gmra.mxu0 %v1297
      %v1316 = vpop.f32.mrf.mxu0
      %v1317 = vadd.f32 %v1294, %v1316
      %1318 = vdwg.mxu0
      %s1319 = scalar_lea.vmem %s2, 40
      %v1320 = vld [vmem:[%s1319] sm:$0xf]
      %v1322 = vsel %vm698, %v1320, 0
      %v1325 = vsel %vm698, %v778, 0
      %v1328 = vsel %vm698, %v779, 0
      %v1331 = vsel %vm698, %v780, 0
      %v1334 = vsel %vm698, %v781, 0
      %v1337 = vsel %vm698, %v782, 0
      %v1340 = vsel %vm698, %v783, 0
      %v1343 = vsel %vm698, %v784, 0
      %v1346 = vsel %vm698, %v785, 0
      %1348 = vmatpush.xpose.msra.mxu0 0.0
      %1349 = vmatpush.xpose.msra.mxu0 0.0
      %1350 = vmatpush.xpose.msra.mxu0 0.0
      %1351 = vmatpush.xpose.msra.mxu0 0.0
      %1352 = vmatpush.xpose.msra.mxu0 0.0
      %1353 = vmatpush.xpose.msra.mxu0 0.0
      %1354 = vmatpush.xpose.msra.mxu0 0.0
      %1355 = vmatpush.xpose.msra.mxu0 0.0
      %1356 = vmatpush.xpose.msra.mxu0 %v1346
      %1357 = vmatpush.xpose.msra.mxu0 %v1343
      %1358 = vmatpush.xpose.msra.mxu0 %v1340
      %1359 = vmatpush.xpose.msra.mxu0 %v1337
      %1360 = vmatpush.xpose.msra.mxu0 %v1334
      %1361 = vmatpush.xpose.msra.mxu0 %v1331
      %1362 = vmatpush.xpose.msra.mxu0 %v1328
      %1363 = vmatpush.xpose.msra.mxu0 %v1325
      %1364 = vmatmul.f32.gmra.mxu0 %v1322
      %v1365 = vpop.f32.mrf.mxu0
      %v1366 = vadd.f32 0.0, %v1365
      %1367 = vdwg.mxu0
      %v1368 = vadd.f32 %v1317, %v1366
      %s1369 = scalar_lea.vmem %s2, 44
      %v1370 = vld [vmem:[%s1369] sm:$0xf]
      %v1372 = vsel %vm698, %v1370, 0
      %v1375 = vsel %vm698, %v786, 0
      %v1378 = vsel %vm698, %v787, 0
      %v1381 = vsel %vm698, %v788, 0
      %v1384 = vsel %vm698, %v789, 0
      %v1387 = vsel %vm698, %v790, 0
      %v1390 = vsel %vm698, %v791, 0
      %v1393 = vsel %vm698, %v792, 0
      %v1396 = vsel %vm698, %v793, 0
      %1398 = vmatpush.xpose.msra.mxu0 0.0
      %1399 = vmatpush.xpose.msra.mxu0 0.0
      %1400 = vmatpush.xpose.msra.mxu0 0.0
      %1401 = vmatpush.xpose.msra.mxu0 0.0
      %1402 = vmatpush.xpose.msra.mxu0 0.0
      %1403 = vmatpush.xpose.msra.mxu0 0.0
      %1404 = vmatpush.xpose.msra.mxu0 0.0
      %1405 = vmatpush.xpose.msra.mxu0 0.0
      %1406 = vmatpush.xpose.msra.mxu0 %v1396
      %1407 = vmatpush.xpose.msra.mxu0 %v1393
      %1408 = vmatpush.xpose.msra.mxu0 %v1390
      %1409 = vmatpush.xpose.msra.mxu0 %v1387
      %1410 = vmatpush.xpose.msra.mxu0 %v1384
      %1411 = vmatpush.xpose.msra.mxu0 %v1381
      %1412 = vmatpush.xpose.msra.mxu0 %v1378
      %1413 = vmatpush.xpose.msra.mxu0 %v1375
      %1414 = vmatmul.f32.gmra.mxu0 %v1372
      %v1415 = vpop.f32.mrf.mxu0
      %v1416 = vadd.f32 0.0, %v1415
      %1417 = vdwg.mxu0
      %v1418 = vadd.f32 %v1368, %v1416
      %s1419 = scalar_lea.vmem %s3, 256
      %v1420 = vld [vmem:[%s1419] sm:$0xff]
      %v1421 = vld [vmem:[%s1419 + $0x8] sm:$0xff]
      %v1422 = vld [vmem:[%s1419 + $0x10] sm:$0xff]
      %v1423 = vld [vmem:[%s1419 + $0x18] sm:$0xff]
      %v1424 = vld [vmem:[%s1419 + $0x20] sm:$0xff]
      %v1425 = vld [vmem:[%s1419 + $0x28] sm:$0xff]
      %v1426 = vld [vmem:[%s1419 + $0x30] sm:$0xff]
      %v1427 = vld [vmem:[%s1419 + $0x38] sm:$0xff]
      %v1428 = vld [vmem:[%s1419 + $0x40] sm:$0xff]
      %v1429 = vld [vmem:[%s1419 + $0x48] sm:$0xff]
      %v1430 = vld [vmem:[%s1419 + $0x50] sm:$0xff]
      %v1431 = vld [vmem:[%s1419 + $0x58] sm:$0xff]
      %v1432 = vld [vmem:[%s1419 + $0x60] sm:$0xff]
      %v1433 = vld [vmem:[%s1419 + $0x68] sm:$0xff]
      %v1434 = vld [vmem:[%s1419 + $0x70] sm:$0xff]
      %v1435 = vld [vmem:[%s1419 + $0x78] sm:$0xff]
      %v1437 = vsel %vm1182, %v1418, 0
      %1439 = vmatpush.msra.mxu0 0.0
      %1440 = vmatpush.msra.mxu0 0.0
      %1441 = vmatpush.msra.mxu0 0.0
      %1442 = vmatpush.msra.mxu0 0.0
      %1443 = vmatpush.msra.mxu0 0.0
      %1444 = vmatpush.msra.mxu0 0.0
      %1445 = vmatpush.msra.mxu0 0.0
      %1446 = vmatpush.msra.mxu0 0.0
      %1447 = vmatpush.msra.mxu0 %v1434
      %1448 = vmatpush.msra.mxu0 %v1432
      %1449 = vmatpush.msra.mxu0 %v1430
      %1450 = vmatpush.msra.mxu0 %v1428
      %1451 = vmatpush.msra.mxu0 %v1426
      %1452 = vmatpush.msra.mxu0 %v1424
      %1453 = vmatpush.msra.mxu0 %v1422
      %1454 = vmatpush.msra.mxu0 %v1420
      %1455 = vmatmul.f32.gmra.mxu0 %v1437
      %v1456 = vpop.f32.mrf.mxu0
      %v1457 = vadd.f32 0.0, %v1456
      %1458 = vdwg.mxu0
      %1459 = vmatpush.msra.mxu0 0.0
      %1460 = vmatpush.msra.mxu0 0.0
      %1461 = vmatpush.msra.mxu0 0.0
      %1462 = vmatpush.msra.mxu0 0.0
      %1463 = vmatpush.msra.mxu0 0.0
      %1464 = vmatpush.msra.mxu0 0.0
      %1465 = vmatpush.msra.mxu0 0.0
      %1466 = vmatpush.msra.mxu0 0.0
      %1467 = vmatpush.msra.mxu0 %v1435
      %1468 = vmatpush.msra.mxu0 %v1433
      %1469 = vmatpush.msra.mxu0 %v1431
      %1470 = vmatpush.msra.mxu0 %v1429
      %1471 = vmatpush.msra.mxu0 %v1427
      %1472 = vmatpush.msra.mxu0 %v1425
      %1473 = vmatpush.msra.mxu0 %v1423
      %1474 = vmatpush.msra.mxu0 %v1421
      %1475 = vmatmul.f32.gmra.mxu0 %v1437
      %v1476 = vpop.f32.mrf.mxu0
      %v1477 = vadd.f32 0.0, %v1476
      %1478 = vdwg.mxu0
      %v1479 = vadd.f32 %v1247, %v1457
      %v1480 = vadd.f32 %v1267, %v1477
      %s1481 = scalar_lea.vmem %s2, 48
      %v1482 = vld [vmem:[%s1481] sm:$0xf]
      %s1483 = scalar_lea.vmem %s2, 52
      %v1484 = vld [vmem:[%s1483] sm:$0xf]
      %v1486 = vsel %vm698, %v1484, 0
      %1488 = vmatpush.xpose.msra.mxu0 0.0
      %1489 = vmatpush.xpose.msra.mxu0 0.0
      %1490 = vmatpush.xpose.msra.mxu0 0.0
      %1491 = vmatpush.xpose.msra.mxu0 0.0
      %1492 = vmatpush.xpose.msra.mxu0 0.0
      %1493 = vmatpush.xpose.msra.mxu0 0.0
      %1494 = vmatpush.xpose.msra.mxu0 0.0
      %1495 = vmatpush.xpose.msra.mxu0 0.0
      %1496 = vmatpush.xpose.msra.mxu0 %v1142
      %1497 = vmatpush.xpose.msra.mxu0 %v1139
      %1498 = vmatpush.xpose.msra.mxu0 %v1136
      %1499 = vmatpush.xpose.msra.mxu0 %v1133
      %1500 = vmatpush.xpose.msra.mxu0 %v1130
      %1501 = vmatpush.xpose.msra.mxu0 %v1127
      %1502 = vmatpush.xpose.msra.mxu0 %v1124
      %1503 = vmatpush.xpose.msra.mxu0 %v1121
      %1504 = vmatmul.f32.gmra.mxu0 %v1486
      %v1505 = vpop.f32.mrf.mxu0
      %v1506 = vadd.f32 0.0, %v1505
      %1507 = vdwg.mxu0
      %v1509 = vsel %vm698, %v1482, 0
      %1511 = vmatpush.xpose.msra.mxu0 0.0
      %1512 = vmatpush.xpose.msra.mxu0 0.0
      %1513 = vmatpush.xpose.msra.mxu0 0.0
      %1514 = vmatpush.xpose.msra.mxu0 0.0
      %1515 = vmatpush.xpose.msra.mxu0 0.0
      %1516 = vmatpush.xpose.msra.mxu0 0.0
      %1517 = vmatpush.xpose.msra.mxu0 0.0
      %1518 = vmatpush.xpose.msra.mxu0 0.0
      %1519 = vmatpush.xpose.msra.mxu0 %v976
      %1520 = vmatpush.xpose.msra.mxu0 %v973
      %1521 = vmatpush.xpose.msra.mxu0 %v970
      %1522 = vmatpush.xpose.msra.mxu0 %v967
      %1523 = vmatpush.xpose.msra.mxu0 %v964
      %1524 = vmatpush.xpose.msra.mxu0 %v961
      %1525 = vmatpush.xpose.msra.mxu0 %v958
      %1526 = vmatpush.xpose.msra.mxu0 %v955
      %1527 = vmatmul.f32.gmra.mxu0 %v1509
      %v1528 = vpop.f32.mrf.mxu0
      %v1529 = vadd.f32 %v1506, %v1528
      %1530 = vdwg.mxu0
      %s1531 = scalar_lea.vmem %s2, 56
      %v1532 = vld [vmem:[%s1531] sm:$0xf]
      %v1534 = vsel %vm698, %v1532, 0
      %1536 = vmatpush.xpose.msra.mxu0 0.0
      %1537 = vmatpush.xpose.msra.mxu0 0.0
      %1538 = vmatpush.xpose.msra.mxu0 0.0
      %1539 = vmatpush.xpose.msra.mxu0 0.0
      %1540 = vmatpush.xpose.msra.mxu0 0.0
      %1541 = vmatpush.xpose.msra.mxu0 0.0
      %1542 = vmatpush.xpose.msra.mxu0 0.0
      %1543 = vmatpush.xpose.msra.mxu0 0.0
      %1544 = vmatpush.xpose.msra.mxu0 %v1396
      %1545 = vmatpush.xpose.msra.mxu0 %v1393
      %1546 = vmatpush.xpose.msra.mxu0 %v1390
      %1547 = vmatpush.xpose.msra.mxu0 %v1387
      %1548 = vmatpush.xpose.msra.mxu0 %v1384
      %1549 = vmatpush.xpose.msra.mxu0 %v1381
      %1550 = vmatpush.xpose.msra.mxu0 %v1378
      %1551 = vmatpush.xpose.msra.mxu0 %v1375
      %1552 = vmatmul.f32.gmra.mxu0 %v1534
      %v1553 = vpop.f32.mrf.mxu0
      %v1554 = vadd.f32 0.0, %v1553
      %1555 = vdwg.mxu0
      %v1556 = vadd.f32 %v1529, %v1554
      %s1557 = scalar_lea.vmem %s2, 60
      %v1558 = vld [vmem:[%s1557] sm:$0xf]
      %v1560 = vsel %vm698, %v1558, 0
      %v1563 = vsel %vm698, %v794, 0
      %v1566 = vsel %vm698, %v795, 0
      %v1569 = vsel %vm698, %v796, 0
      %v1572 = vsel %vm698, %v797, 0
      %v1575 = vsel %vm698, %v798, 0
      %v1578 = vsel %vm698, %v799, 0
      %v1581 = vsel %vm698, %v800, 0
      %v1584 = vsel %vm698, %v801, 0
      %1586 = vmatpush.xpose.msra.mxu0 0.0
      %1587 = vmatpush.xpose.msra.mxu0 0.0
      %1588 = vmatpush.xpose.msra.mxu0 0.0
      %1589 = vmatpush.xpose.msra.mxu0 0.0
      %1590 = vmatpush.xpose.msra.mxu0 0.0
      %1591 = vmatpush.xpose.msra.mxu0 0.0
      %1592 = vmatpush.xpose.msra.mxu0 0.0
      %1593 = vmatpush.xpose.msra.mxu0 0.0
      %1594 = vmatpush.xpose.msra.mxu0 %v1584
      %1595 = vmatpush.xpose.msra.mxu0 %v1581
      %1596 = vmatpush.xpose.msra.mxu0 %v1578
      %1597 = vmatpush.xpose.msra.mxu0 %v1575
      %1598 = vmatpush.xpose.msra.mxu0 %v1572
      %1599 = vmatpush.xpose.msra.mxu0 %v1569
      %1600 = vmatpush.xpose.msra.mxu0 %v1566
      %1601 = vmatpush.xpose.msra.mxu0 %v1563
      %1602 = vmatmul.f32.gmra.mxu0 %v1560
      %v1603 = vpop.f32.mrf.mxu0
      %v1604 = vadd.f32 0.0, %v1603
      %1605 = vdwg.mxu0
      %v1606 = vadd.f32 %v1556, %v1604
      %s1607 = scalar_lea.vmem %s3, 384
      %v1608 = vld [vmem:[%s1607] sm:$0xff]
      %v1609 = vld [vmem:[%s1607 + $0x8] sm:$0xff]
      %v1610 = vld [vmem:[%s1607 + $0x10] sm:$0xff]
      %v1611 = vld [vmem:[%s1607 + $0x18] sm:$0xff]
      %v1612 = vld [vmem:[%s1607 + $0x20] sm:$0xff]
      %v1613 = vld [vmem:[%s1607 + $0x28] sm:$0xff]
      %v1614 = vld [vmem:[%s1607 + $0x30] sm:$0xff]
      %v1615 = vld [vmem:[%s1607 + $0x38] sm:$0xff]
      %v1616 = vld [vmem:[%s1607 + $0x40] sm:$0xff]
      %v1617 = vld [vmem:[%s1607 + $0x48] sm:$0xff]
      %v1618 = vld [vmem:[%s1607 + $0x50] sm:$0xff]
      %v1619 = vld [vmem:[%s1607 + $0x58] sm:$0xff]
      %v1620 = vld [vmem:[%s1607 + $0x60] sm:$0xff]
      %v1621 = vld [vmem:[%s1607 + $0x68] sm:$0xff]
      %v1622 = vld [vmem:[%s1607 + $0x70] sm:$0xff]
      %v1623 = vld [vmem:[%s1607 + $0x78] sm:$0xff]
      %v1625 = vsel %vm1182, %v1606, 0
      %1627 = vmatpush.msra.mxu0 0.0
      %1628 = vmatpush.msra.mxu0 0.0
      %1629 = vmatpush.msra.mxu0 0.0
      %1630 = vmatpush.msra.mxu0 0.0
      %1631 = vmatpush.msra.mxu0 0.0
      %1632 = vmatpush.msra.mxu0 0.0
      %1633 = vmatpush.msra.mxu0 0.0
      %1634 = vmatpush.msra.mxu0 0.0
      %1635 = vmatpush.msra.mxu0 %v1622
      %1636 = vmatpush.msra.mxu0 %v1620
      %1637 = vmatpush.msra.mxu0 %v1618
      %1638 = vmatpush.msra.mxu0 %v1616
      %1639 = vmatpush.msra.mxu0 %v1614
      %1640 = vmatpush.msra.mxu0 %v1612
      %1641 = vmatpush.msra.mxu0 %v1610
      %1642 = vmatpush.msra.mxu0 %v1608
      %1643 = vmatmul.f32.gmra.mxu0 %v1625
      %v1644 = vpop.f32.mrf.mxu0
      %v1645 = vadd.f32 0.0, %v1644
      %1646 = vdwg.mxu0
      %1647 = vmatpush.msra.mxu0 0.0
      %1648 = vmatpush.msra.mxu0 0.0
      %1649 = vmatpush.msra.mxu0 0.0
      %1650 = vmatpush.msra.mxu0 0.0
      %1651 = vmatpush.msra.mxu0 0.0
      %1652 = vmatpush.msra.mxu0 0.0
      %1653 = vmatpush.msra.mxu0 0.0
      %1654 = vmatpush.msra.mxu0 0.0
      %1655 = vmatpush.msra.mxu0 %v1623
      %1656 = vmatpush.msra.mxu0 %v1621
      %1657 = vmatpush.msra.mxu0 %v1619
      %1658 = vmatpush.msra.mxu0 %v1617
      %1659 = vmatpush.msra.mxu0 %v1615
      %1660 = vmatpush.msra.mxu0 %v1613
      %1661 = vmatpush.msra.mxu0 %v1611
      %1662 = vmatpush.msra.mxu0 %v1609
      %1663 = vmatmul.f32.gmra.mxu0 %v1625
      %v1664 = vpop.f32.mrf.mxu0
      %v1665 = vadd.f32 0.0, %v1664
      %1666 = vdwg.mxu0
      %v1667 = vadd.f32 %v1479, %v1645
      %v1668 = vadd.f32 %v1480, %v1665
      %v1671 = vrot.slane %v1668, 4
      %vm1672 = vcmask 1043456
      %v1673 = vsel %vm1672, %v1667, %v1671
      %1675 = vst [vmem:[%s264] sm:$0xff] %v1673
      %v1676 = vsel %vm1672, %v1667, 0.0
      %v1677 = vsel %vm1672, %v1668, 0.0
      %v1678 = vadd.f32 %v1676, %v1677
      %1679 = vadd.xlane.f32.xlu0 %v1678
      %v1680 = vpop.xlane.xlu0 %1679
      %vm1681 = vcmask 3072
      %1682 = vst.msk [vmem:[%s268] sm:$0xf] %vm1681, %v1680
      %v1683 = vmul.f32 %v1667, %v1667
      %v1684 = vmul.f32 %v1668, %v1668
      %v1685 = vsel %vm1672, %v1683, 0.0
      %v1686 = vsel %vm1672, %v1684, 0.0
      %v1687 = vadd.f32 %v1685, %v1686
      %1688 = vadd.xlane.f32.xlu0 %v1687
      %v1689 = vpop.xlane.xlu0 %1688
      %1690 = vst.msk [vmem:[%s272] sm:$0xf] %vm1681, %v1689
      %p1691 = scmp.lt.s32.totalorder %s18, 1
      %s1692 = scalar_select %p1691, %s18, 1
      %s1693 = smul.addr %s1692, 2
      %s1694 = smul.addr %s1693, 4
      %s1695 = scalar_lea.vmem %s4, %s1694
      %p1696 = scmp.lt.s32.totalorder %s18, 1
      %s1697 = scalar_select %p1696, %s18, 1
      %s1698 = smul.addr %s1697, 4
      %s1699 = scalar_lea.vmem %s5, %s1698
      %p1700 = scmp.lt.s32.totalorder %s18, 1
      %s1701 = scalar_select %p1700, %s18, 1
      %s1702 = smul.addr %s1701, 4
      %s1703 = scalar_lea.vmem %s6, %s1702
      // Predicated region
      $region37: #{unet_innermost_forward.2} parent=35 // pred_check
        %p1704 = pneg %p125
      $region38: #{unet_innermost_forward.2} parent=35 // pred_check_branch
        %1706 = sbr.rel (%p1704) target = $region40
      $region39: #{unet_innermost_forward.2} parent=35 // pred_region
        _
      $region40: #{unet_innermost_forward.2} parent=35 // pred_fallthru
        _
      // Predicated region
      $region41: #{unet_innermost_forward.2} parent=35 // pred_check
        %p1707 = pneg %p151
      $region42: #{unet_innermost_forward.2} parent=35 // pred_check_branch
        %1709 = sbr.rel (%p1707) target = $region44
      $region43: #{unet_innermost_forward.2} parent=35 // pred_region
        _
      $region44: #{unet_innermost_forward.2} parent=35 // pred_fallthru
        _
      // Predicated region
      $region45: #{unet_innermost_forward.2} parent=35 // pred_check
        %p1710 = pneg %p177
      $region46: #{unet_innermost_forward.2} parent=35 // pred_check_branch
        %1712 = sbr.rel (%p1710) target = $region48
      $region47: #{unet_innermost_forward.2} parent=35 // pred_region
        _
      $region48: #{unet_innermost_forward.2} parent=35 // pred_fallthru
        _
    $region36: #{unet_innermost_forward.2} parent=5 // pred_fallthru
      _
    %p1713 = scmp.le.s32.totalorder 2, %s13
    // Predicated region
    $region49: #{unet_innermost_forward.2} parent=5 // pred_check
      %p1714 = pneg %p1713
    $region50: #{unet_innermost_forward.2} parent=5 // pred_check_branch
      %1716 = sbr.rel (%p1714) target = $region52
    $region51: #{unet_innermost_forward.2} parent=5 // pred_region
      %s1717 = ssub.s32 %s13, 2
      // Predicated region
      $region53: #{unet_innermost_forward.2} parent=51 // pred_check
        %p1718 = pneg %p131
      $region54: #{unet_innermost_forward.2} parent=51 // pred_check_branch
        %1720 = sbr.rel (%p1718) target = $region56
      $region55: #{unet_innermost_forward.2} parent=51 // pred_region
        %p1721 = scmp.lt.s32.totalorder %s19, 1
        %s1722 = scalar_select %p1721, %s19, 1
        %s1723 = smul.addr %s1722, 2
        %s1724 = smul.addr %s1723, 4
        %s1725 = scalar_lea.vmem %s4, %s1724
      $region56: #{unet_innermost_forward.2} parent=51 // pred_fallthru
        _
      // Predicated region
      $region57: #{unet_innermost_forward.2} parent=51 // pred_check
        %p1726 = pneg %p157
      $region58: #{unet_innermost_forward.2} parent=51 // pred_check_branch
        %1728 = sbr.rel (%p1726) target = $region60
      $region59: #{unet_innermost_forward.2} parent=51 // pred_region
        %p1729 = scmp.lt.s32.totalorder %s19, 1
        %s1730 = scalar_select %p1729, %s19, 1
        %s1731 = smul.addr %s1730, 4
        %s1732 = scalar_lea.vmem %s5, %s1731
      $region60: #{unet_innermost_forward.2} parent=51 // pred_fallthru
        _
      // Predicated region
      $region61: #{unet_innermost_forward.2} parent=51 // pred_check
        %p1733 = pneg %p183
      $region62: #{unet_innermost_forward.2} parent=51 // pred_check_branch
        %1735 = sbr.rel (%p1733) target = $region64
      $region63: #{unet_innermost_forward.2} parent=51 // pred_region
        %p1736 = scmp.lt.s32.totalorder %s19, 1
        %s1737 = scalar_select %p1736, %s19, 1
        %s1738 = smul.addr %s1737, 4
        %s1739 = scalar_lea.vmem %s6, %s1738
      $region64: #{unet_innermost_forward.2} parent=51 // pred_fallthru
        _
    $region52: #{unet_innermost_forward.2} parent=5 // pred_fallthru
      _
  $region6: #{unet_innermost_forward.2} parent=0 // loop_footer
    %s17 = sadd.s32 1, %s13
  $region7: #{unet_innermost_forward.2} parent=0 // loop_footer_branch
    %12 = sbr.rel target = $region3
  $region8: #{unet_innermost_forward.2} parent=0 // loop_exit
    _

</llo_original>
